<compile_context>
chip_gen: v7x
topology: tpu7x:2x2x1
jax: 0.10.0
libtpu: 0.0.40
codegen_flags: <defaults>
</compile_context>

<pallas_src>
import numpy as np
import jax
import jax.numpy as jnp
from jax.experimental import pallas as pl
from jax.experimental.pallas import tpu as pltpu

# ----------------------------- Pallas kernels --------------------------------


def _conv_relu_pool_kernel(p_ref, w_ref, b_ref, o_ref):
    """Fused conv-matmul + 2x2 max pool + bias + ReLU.

    p_ref: (4, K, M)   im2col patches grouped by 2x2 pooling-window corner
    w_ref: (C_out, K)  torch conv weight reshaped to (C_out, C_in*k*k)
    b_ref: (C_out, 1)
    o_ref: (C_out, M)  pooled, activated output (channels-major, spatial in lanes)
    """
    w = w_ref[...]
    acc = jnp.dot(w, p_ref[0], preferred_element_type=jnp.float32)
    for q in range(1, 4):
        acc = jnp.maximum(
            acc, jnp.dot(w, p_ref[q], preferred_element_type=jnp.float32))
    # relu(max_q(y_q) + b) == maxpool(relu(y + b)) exactly (monotone ops commute with max).
    o_ref[...] = jnp.maximum(acc + b_ref[...], 0.0).astype(o_ref.dtype)


def conv_relu_pool(pt, wmat, bias):
    """pt: (4, K, M), wmat: (C_out, K), bias: (C_out, 1) -> (C_out, M)."""
    _, K, M = pt.shape
    C_out = wmat.shape[0]
    return pl.pallas_call(
        _conv_relu_pool_kernel,
        out_shape=jax.ShapeDtypeStruct((C_out, M), jnp.float32),
        grid=(1,),
        in_specs=[
            pl.BlockSpec((4, K, M), lambda i: (0, 0, 0)),
            pl.BlockSpec((C_out, K), lambda i: (0, 0)),
            pl.BlockSpec((C_out, 1), lambda i: (0, 0)),
        ],
        out_specs=pl.BlockSpec((C_out, M), lambda i: (0, 0)),
        compiler_params=pltpu.CompilerParams(
            dimension_semantics=("arbitrary",)),
    )(pt, wmat, bias)


def _make_fc_stack_kernel(num_hidden):
    """Fused FC stack: num_hidden x (Linear + ReLU) then output Linear, all in VMEM."""
    def kernel(*refs):
        x_ref, o_ref = refs[0], refs[-1]
        h = x_ref[...]
        for l in range(num_hidden):
            w_ref, b_ref = refs[1 + 2 * l], refs[2 + 2 * l]
            h = jnp.maximum(
                jnp.dot(h, w_ref[...], preferred_element_type=jnp.float32)
                + b_ref[...], 0.0)
        w_ref, b_ref = refs[-3], refs[-2]
        o_ref[...] = (jnp.dot(h, w_ref[...], preferred_element_type=jnp.float32)
                      + b_ref[...]).astype(o_ref.dtype)
    return kernel


def fc_stack(x, hidden_wb, out_wb):
    """x: (B, F); hidden_wb: list of (W (F,F) in (in,out) layout, b (1,F));
    out_wb: (W (F, C), b (1, C)).  Returns logits (B, C)."""
    operands = [x]
    for w, b in hidden_wb:
        operands += [w, b]
    operands += [out_wb[0], out_wb[1]]
    B = x.shape[0]
    C = out_wb[0].shape[1]
    in_specs = [pl.BlockSpec(a.shape, lambda i, n=a.ndim: (0,) * n)
                for a in operands]
    return pl.pallas_call(
        _make_fc_stack_kernel(len(hidden_wb)),
        out_shape=jax.ShapeDtypeStruct((B, C), jnp.float32),
        grid=(1,),
        in_specs=in_specs,
        out_specs=pl.BlockSpec((B, C), lambda i: (0, 0)),
        compiler_params=pltpu.CompilerParams(
            dimension_semantics=("arbitrary",)),
    )(*operands)


# ------------------------------ JAX glue --------------------------------------


def pooled_patches(x, k, pad):
    """x: (B, C, H, W) NCHW -> (4, C*k*k, B*Hh*Wh) im2col patches grouped by the
    2x2 pooling-window corner of the conv-output pixel they belong to.

    Group q = 2*a + b holds patches of conv-output pixels (2i+a, 2j+b); columns are
    ordered (batch, i, j); feature order is (c_in, ky, kx), matching torch's
    weight.reshape(C_out, C_in*k*k)."""
    B, C, H, W = x.shape
    Ho = H - k + 2 * pad + 1
    Wo = W - k + 2 * pad + 1
    Hh, Wh = Ho // 2, Wo // 2
    xp = jnp.pad(x, ((0, 0), (0, 0), (pad, pad), (pad, pad)))
    wins = [xp[:, :, ky:ky + Ho, kx:kx + Wo]
            for ky in range(k) for kx in range(k)]
    shift = jnp.stack(wins, axis=2)                      # (B, C, k*k, Ho, Wo)
    parts = []
    for a in range(2):
        for b in range(2):
            sub = shift[:, :, :, a:a + 2 * Hh:2, b:b + 2 * Wh:2]   # (B,C,kk,Hh,Wh)
            sub = sub.reshape(B, C * k * k, Hh * Wh)
            sub = sub.transpose(1, 0, 2).reshape(C * k * k, B * Hh * Wh)
            parts.append(sub)
    return jnp.stack(parts, axis=0), Hh, Wh


def cnn_forward(x, params, conv_padding):
    """Pallas-backed forward pass.  x: (B, C_in, 28, 28) NCHW float32."""
    B = x.shape[0]
    # conv -> ReLU -> MaxPool2d(2) blocks, each a single fused Pallas kernel.
    for (w, b) in params["conv"]:
        C_out, C_in, k, _ = w.shape
        pt, Hh, Wh = pooled_patches(x, k, conv_padding)
        y = conv_relu_pool(pt, w.reshape(C_out, C_in * k * k),
                           b.reshape(C_out, 1))              # (C_out, B*Hh*Wh)
        x = y.reshape(C_out, B, Hh, Wh).transpose(1, 0, 2, 3)  # back to NCHW

    # flatten (matches torch's x.view(B, -1) on NCHW)
    xf = x.reshape(B, -1)

    # fused FC stack: hidden Linear+ReLU layers and the output Linear in one kernel.
    hidden_wb = [(w.T, b.reshape(1, -1)) for (w, b) in params["fc"]]
    w, b = params["out"]
    return fc_stack(xf, hidden_wb, (w.T, b.reshape(1, -1)))


# -------------------------- pure-JAX reference --------------------------------


def reference_forward(x, params, conv_padding):
    for (w, b) in params["conv"]:
        x = jax.lax.conv_general_dilated(
            x, w, window_strides=(1, 1),
            padding=[(conv_padding, conv_padding), (conv_padding, conv_padding)],
            dimension_numbers=("NCHW", "OIHW", "NCHW"))
        x = jnp.maximum(x + b[None, :, None, None], 0.0)
        B, C, H, W = x.shape
        x = x.reshape(B, C, H // 2, 2, W // 2, 2).max(axis=(3, 5))
    xf = x.reshape(x.shape[0], -1)
    for (w, b) in params["fc"]:
        xf = jnp.maximum(xf @ w.T + b, 0.0)
    w, b = params["out"]
    return xf @ w.T + b


# ------------------------------- params ---------------------------------------


def init_linear_like(key, fan_in, fan_out, weight_shape):
    k1, k2 = jax.random.split(key)
    bound = 1.0 / np.sqrt(fan_in)
    w = jax.random.uniform(k1, weight_shape, minval=-bound, maxval=bound, dtype=jnp.float32)
    b = jax.random.uniform(k2, (fan_out,), minval=-bound, maxval=bound, dtype=jnp.float32)
    return w, b


def make_params(key, num_conv_layers, conv_out_channels, conv_kernel_size,
                num_hidden_layers, input_channels, num_classes, feature_size):
    params = {"conv": [], "fc": [], "out": None}
    in_ch = input_channels
    for _ in range(num_conv_layers):
        key, sub = jax.random.split(key)
        fan_in = in_ch * conv_kernel_size * conv_kernel_size
        params["conv"].append(
            init_linear_like(sub, fan_in, conv_out_channels,
                             (conv_out_channels, in_ch, conv_kernel_size, conv_kernel_size)))
        in_ch = conv_out_channels
    for _ in range(num_hidden_layers):
        key, sub = jax.random.split(key)
        params["fc"].append(
            init_linear_like(sub, feature_size, feature_size, (feature_size, feature_size)))
    key, sub = jax.random.split(key)
    params["out"] = init_linear_like(sub, feature_size, num_classes,
                                     (num_classes, feature_size))
    return params


def compute_flattened_size(input_size, num_conv_layers, kernel_size, padding, out_channels):
    for _ in range(num_conv_layers):
        input_size = input_size - kernel_size + 2 * padding + 1
        input_size //= 2
    return input_size * input_size * out_channels


# --------------------------------- main ----------------------------------------

if __name__ == "__main__":
    # CNN config (small)
    NUM_CONV_LAYERS = 2
    CONV_OUT_CHANNELS = 8
    CONV_KERNEL_SIZE = 3
    CONV_PADDING = 1
    NUM_HIDDEN_LAYERS = 1
    INPUT_CHANNELS = 1
    NUM_CLASSES = 10
    BATCH = 2

    feature_size = compute_flattened_size(
        28, NUM_CONV_LAYERS, CONV_KERNEL_SIZE, CONV_PADDING, CONV_OUT_CHANNELS)  # 7*7*8 = 392

    key = jax.random.PRNGKey(0)
    key, pkey, xkey = jax.random.split(key, 3)
    params = make_params(pkey, NUM_CONV_LAYERS, CONV_OUT_CHANNELS, CONV_KERNEL_SIZE,
                         NUM_HIDDEN_LAYERS, INPUT_CHANNELS, NUM_CLASSES, feature_size)

    x = jax.random.normal(xkey, (BATCH, INPUT_CHANNELS, 28, 28), dtype=jnp.float32)

    out = jax.jit(lambda xx: cnn_forward(xx, params, CONV_PADDING))(x)
    out = jax.block_until_ready(out)

    ref = reference_forward(x, params, CONV_PADDING)
    assert out.shape == (BATCH, NUM_CLASSES), out.shape
    np.testing.assert_allclose(np.asarray(out), np.asarray(ref), rtol=1e-4, atol=1e-4)

    print("KERNEL_OK")
</pallas_src>

<mosaic_0001>
module attributes {stable_mosaic.version = 11 : i64} {
  func.func @_conv_relu_pool_kernel(%arg0: i32, %arg1: memref<4x9x392xf32, #tpu.memory_space<vmem>>, %arg2: memref<8x9xf32, #tpu.memory_space<vmem>>, %arg3: memref<8x1xf32, #tpu.memory_space<vmem>>, %arg4: memref<8x392xf32, #tpu.memory_space<vmem>>) attributes {dimension_semantics = [#tpu.dimension_semantics<arbitrary>], iteration_bounds = array<i64: 1>, scalar_prefetch = 0 : i64, scratch_operands = 0 : i64, tpu.core_type = #tpu.core_type<tc>, window_params = [{pipeline_mode = #tpu.pipeline_mode<synchronous>, transform_indices = @transform_0, window_bounds = array<i64: 4, 9, 392>}, {pipeline_mode = #tpu.pipeline_mode<synchronous>, transform_indices = @transform_1, window_bounds = array<i64: 8, 9>}, {pipeline_mode = #tpu.pipeline_mode<synchronous>, transform_indices = @transform_2, window_bounds = array<i64: 8, 1>}, {pipeline_mode = #tpu.pipeline_mode<synchronous>, transform_indices = @transform_3, window_bounds = array<i64: 8, 392>}]} {
    %c0 = arith.constant 0 : index
    %c0_0 = arith.constant 0 : index
    %0 = vector.load %arg2[%c0, %c0_0] : memref<8x9xf32, #tpu.memory_space<vmem>>, vector<8x9xf32>
    %c0_1 = arith.constant 0 : index
    %c0_2 = arith.constant 0 : index
    %c0_3 = arith.constant 0 : index
    %1 = vector.load %arg1[%c0_1, %c0_2, %c0_3] : memref<4x9x392xf32, #tpu.memory_space<vmem>>, vector<1x9x392xf32>
    %2 = vector.shape_cast %1 : vector<1x9x392xf32> to vector<9x392xf32>
    %cst = arith.constant dense<0.000000e+00> : vector<8x392xf32>
    %3 = tpu.matmul %0, %2, %cst {dimension_numbers = #tpu.dot_dimension_numbers<[1], [0], [0], [1], [0, 0, 1, 1], [], []>} : vector<8x9xf32>, vector<9x392xf32>, vector<8x392xf32> -> vector<8x392xf32>
    %c1 = arith.constant 1 : index
    %c0_4 = arith.constant 0 : index
    %c0_5 = arith.constant 0 : index
    %4 = vector.load %arg1[%c1, %c0_4, %c0_5] : memref<4x9x392xf32, #tpu.memory_space<vmem>>, vector<1x9x392xf32>
    %5 = vector.shape_cast %4 : vector<1x9x392xf32> to vector<9x392xf32>
    %cst_6 = arith.constant dense<0.000000e+00> : vector<8x392xf32>
    %6 = tpu.matmul %0, %5, %cst_6 {dimension_numbers = #tpu.dot_dimension_numbers<[1], [0], [0], [1], [0, 0, 1, 1], [], []>} : vector<8x9xf32>, vector<9x392xf32>, vector<8x392xf32> -> vector<8x392xf32>
    %7 = arith.maximumf %3, %6 : vector<8x392xf32>
    %c2 = arith.constant 2 : index
    %c0_7 = arith.constant 0 : index
    %c0_8 = arith.constant 0 : index
    %8 = vector.load %arg1[%c2, %c0_7, %c0_8] : memref<4x9x392xf32, #tpu.memory_space<vmem>>, vector<1x9x392xf32>
    %9 = vector.shape_cast %8 : vector<1x9x392xf32> to vector<9x392xf32>
    %cst_9 = arith.constant dense<0.000000e+00> : vector<8x392xf32>
    %10 = tpu.matmul %0, %9, %cst_9 {dimension_numbers = #tpu.dot_dimension_numbers<[1], [0], [0], [1], [0, 0, 1, 1], [], []>} : vector<8x9xf32>, vector<9x392xf32>, vector<8x392xf32> -> vector<8x392xf32>
    %11 = arith.maximumf %7, %10 : vector<8x392xf32>
    %c3 = arith.constant 3 : index
    %c0_10 = arith.constant 0 : index
    %c0_11 = arith.constant 0 : index
    %12 = vector.load %arg1[%c3, %c0_10, %c0_11] : memref<4x9x392xf32, #tpu.memory_space<vmem>>, vector<1x9x392xf32>
    %13 = vector.shape_cast %12 : vector<1x9x392xf32> to vector<9x392xf32>
    %cst_12 = arith.constant dense<0.000000e+00> : vector<8x392xf32>
    %14 = tpu.matmul %0, %13, %cst_12 {dimension_numbers = #tpu.dot_dimension_numbers<[1], [0], [0], [1], [0, 0, 1, 1], [], []>} : vector<8x9xf32>, vector<9x392xf32>, vector<8x392xf32> -> vector<8x392xf32>
    %15 = arith.maximumf %11, %14 : vector<8x392xf32>
    %c0_13 = arith.constant 0 : index
    %c0_14 = arith.constant 0 : index
    %16 = vector.load %arg3[%c0_13, %c0_14] : memref<8x1xf32, #tpu.memory_space<vmem>>, vector<8x1xf32>
    %17 = vector.broadcast %16 : vector<8x1xf32> to vector<8x392xf32>
    %18 = arith.addf %15, %17 : vector<8x392xf32>
    %cst_15 = arith.constant 0.000000e+00 : f32
    %19 = vector.broadcast %cst_15 : f32 to vector<8x392xf32>
    %20 = arith.maximumf %18, %19 : vector<8x392xf32>
    %c0_16 = arith.constant 0 : index
    %c0_17 = arith.constant 0 : index
    %21 = vector.load %arg4[%c0_16, %c0_17] : memref<8x392xf32, #tpu.memory_space<vmem>>, vector<8x392xf32>
    tpu.vector_store %arg4[%c0_16, %c0_17], %20 {strides = array<i32>} : memref<8x392xf32, #tpu.memory_space<vmem>>, vector<8x392xf32>,
    return
  }
  func.func @transform_0(%arg0: i32) -> (i32, i32, i32) {
    %c0_i32 = arith.constant 0 : i32
    %c0_i32_0 = arith.constant 0 : i32
    %c0_i32_1 = arith.constant 0 : i32
    %c0_i32_2 = arith.constant 0 : i32
    return %c0_i32, %c0_i32_0, %c0_i32_1 : i32, i32, i32
  }
  func.func @transform_1(%arg0: i32) -> (i32, i32) {
    %c0_i32 = arith.constant 0 : i32
    %c0_i32_0 = arith.constant 0 : i32
    %c0_i32_1 = arith.constant 0 : i32
    return %c0_i32, %c0_i32_0 : i32, i32
  }
  func.func @transform_2(%arg0: i32) -> (i32, i32) {
    %c0_i32 = arith.constant 0 : i32
    %c0_i32_0 = arith.constant 0 : i32
    %c0_i32_1 = arith.constant 0 : i32
    return %c0_i32, %c0_i32_0 : i32, i32
  }
  func.func @transform_3(%arg0: i32) -> (i32, i32) {
    %c0_i32 = arith.constant 0 : i32
    %c0_i32_0 = arith.constant 0 : i32
    %c0_i32_1 = arith.constant 0 : i32
    return %c0_i32, %c0_i32_0 : i32, i32
  }
}

module attributes {stable_mosaic.version = 11 : i64} {
  func.func @kernel(%arg0: i32, %arg1: memref<2x392xf32, #tpu.memory_space<vmem>>, %arg2: memref<392x392xf32, #tpu.memory_space<vmem>>, %arg3: memref<1x392xf32, #tpu.memory_space<vmem>>, %arg4: memref<392x10xf32, #tpu.memory_space<vmem>>, %arg5: memref<1x10xf32, #tpu.memory_space<vmem>>, %arg6: memref<2x10xf32, #tpu.memory_space<vmem>>) attributes {dimension_semantics = [#tpu.dimension_semantics<arbitrary>], iteration_bounds = array<i64: 1>, scalar_prefetch = 0 : i64, scratch_operands = 0 : i64, tpu.core_type = #tpu.core_type<tc>, window_params = [{pipeline_mode = #tpu.pipeline_mode<synchronous>, transform_indices = @transform_0, window_bounds = array<i64: 2, 392>}, {pipeline_mode = #tpu.pipeline_mode<synchronous>, transform_indices = @transform_1, window_bounds = array<i64: 392, 392>}, {pipeline_mode = #tpu.pipeline_mode<synchronous>, transform_indices = @transform_2, window_bounds = array<i64: 1, 392>}, {pipeline_mode = #tpu.pipeline_mode<synchronous>, transform_indices = @transform_3, window_bounds = array<i64: 392, 10>}, {pipeline_mode = #tpu.pipeline_mode<synchronous>, transform_indices = @transform_4, window_bounds = array<i64: 1, 10>}, {pipeline_mode = #tpu.pipeline_mode<synchronous>, transform_indices = @transform_5, window_bounds = array<i64: 2, 10>}]} {
    %c0 = arith.constant 0 : index
    %c0_0 = arith.constant 0 : index
    %0 = vector.load %arg1[%c0, %c0_0] : memref<2x392xf32, #tpu.memory_space<vmem>>, vector<2x392xf32>
    %c0_1 = arith.constant 0 : index
    %c0_2 = arith.constant 0 : index
    %1 = vector.load %arg2[%c0_1, %c0_2] : memref<392x392xf32, #tpu.memory_space<vmem>>, vector<392x392xf32>
    %cst = arith.constant dense<0.000000e+00> : vector<2x392xf32>
    %2 = tpu.matmul %0, %1, %cst {dimension_numbers = #tpu.dot_dimension_numbers<[1], [0], [0], [1], [0, 0, 1, 1], [], []>} : vector<2x392xf32>, vector<392x392xf32>, vector<2x392xf32> -> vector<2x392xf32>
    %c0_3 = arith.constant 0 : index
    %c0_4 = arith.constant 0 : index
    %3 = vector.load %arg3[%c0_3, %c0_4] : memref<1x392xf32, #tpu.memory_space<vmem>>, vector<1x392xf32>
    %4 = vector.broadcast %3 : vector<1x392xf32> to vector<2x392xf32>
    %5 = arith.addf %2, %4 : vector<2x392xf32>
    %cst_5 = arith.constant 0.000000e+00 : f32
    %6 = vector.broadcast %cst_5 : f32 to vector<2x392xf32>
    %7 = arith.maximumf %5, %6 : vector<2x392xf32>
    %c0_6 = arith.constant 0 : index
    %c0_7 = arith.constant 0 : index
    %8 = vector.load %arg4[%c0_6, %c0_7] : memref<392x10xf32, #tpu.memory_space<vmem>>, vector<392x10xf32>
    %cst_8 = arith.constant dense<0.000000e+00> : vector<2x10xf32>
    %9 = tpu.matmul %7, %8, %cst_8 {dimension_numbers = #tpu.dot_dimension_numbers<[1], [0], [0], [1], [0, 0, 1, 1], [], []>} : vector<2x392xf32>, vector<392x10xf32>, vector<2x10xf32> -> vector<2x10xf32>
    %c0_9 = arith.constant 0 : index
    %c0_10 = arith.constant 0 : index
    %10 = vector.load %arg5[%c0_9, %c0_10] : memref<1x10xf32, #tpu.memory_space<vmem>>, vector<1x10xf32>
    %11 = vector.broadcast %10 : vector<1x10xf32> to vector<2x10xf32>
    %12 = arith.addf %9, %11 : vector<2x10xf32>
    %c0_11 = arith.constant 0 : index
    %c0_12 = arith.constant 0 : index
    %13 = vector.load %arg6[%c0_11, %c0_12] : memref<2x10xf32, #tpu.memory_space<vmem>>, vector<2x10xf32>
    tpu.vector_store %arg6[%c0_11, %c0_12], %12 {strides = array<i32>} : memref<2x10xf32, #tpu.memory_space<vmem>>, vector<2x10xf32>,
    return
  }
  func.func @transform_0(%arg0: i32) -> (i32, i32) {
    %c0_i32 = arith.constant 0 : i32
    %c0_i32_0 = arith.constant 0 : i32
    %c0_i32_1 = arith.constant 0 : i32
    return %c0_i32, %c0_i32_0 : i32, i32
  }
  func.func @transform_1(%arg0: i32) -> (i32, i32) {
    %c0_i32 = arith.constant 0 : i32
    %c0_i32_0 = arith.constant 0 : i32
    %c0_i32_1 = arith.constant 0 : i32
    return %c0_i32, %c0_i32_0 : i32, i32
  }
  func.func @transform_2(%arg0: i32) -> (i32, i32) {
    %c0_i32 = arith.constant 0 : i32
    %c0_i32_0 = arith.constant 0 : i32
    %c0_i32_1 = arith.constant 0 : i32
    return %c0_i32, %c0_i32_0 : i32, i32
  }
  func.func @transform_3(%arg0: i32) -> (i32, i32) {
    %c0_i32 = arith.constant 0 : i32
    %c0_i32_0 = arith.constant 0 : i32
    %c0_i32_1 = arith.constant 0 : i32
    return %c0_i32, %c0_i32_0 : i32, i32
  }
  func.func @transform_4(%arg0: i32) -> (i32, i32) {
    %c0_i32 = arith.constant 0 : i32
    %c0_i32_0 = arith.constant 0 : i32
    %c0_i32_1 = arith.constant 0 : i32
    return %c0_i32, %c0_i32_0 : i32, i32
  }
  func.func @transform_5(%arg0: i32) -> (i32, i32) {
    %c0_i32 = arith.constant 0 : i32
    %c0_i32_0 = arith.constant 0 : i32
    %c0_i32_1 = arith.constant 0 : i32
    return %c0_i32, %c0_i32_0 : i32, i32
  }
}

module attributes {stable_mosaic.version = 11 : i64} {
  func.func @_conv_relu_pool_kernel(%arg0: i32, %arg1: memref<4x72x98xf32, #tpu.memory_space<vmem>>, %arg2: memref<8x72xf32, #tpu.memory_space<vmem>>, %arg3: memref<8x1xf32, #tpu.memory_space<vmem>>, %arg4: memref<8x98xf32, #tpu.memory_space<vmem>>) attributes {dimension_semantics = [#tpu.dimension_semantics<arbitrary>], iteration_bounds = array<i64: 1>, scalar_prefetch = 0 : i64, scratch_operands = 0 : i64, tpu.core_type = #tpu.core_type<tc>, window_params = [{pipeline_mode = #tpu.pipeline_mode<synchronous>, transform_indices = @transform_0, window_bounds = array<i64: 4, 72, 98>}, {pipeline_mode = #tpu.pipeline_mode<synchronous>, transform_indices = @transform_1, window_bounds = array<i64: 8, 72>}, {pipeline_mode = #tpu.pipeline_mode<synchronous>, transform_indices = @transform_2, window_bounds = array<i64: 8, 1>}, {pipeline_mode = #tpu.pipeline_mode<synchronous>, transform_indices = @transform_3, window_bounds = array<i64: 8, 98>}]} {
    %c0 = arith.constant 0 : index
    %c0_0 = arith.constant 0 : index
    %0 = vector.load %arg2[%c0, %c0_0] : memref<8x72xf32, #tpu.memory_space<vmem>>, vector<8x72xf32>
    %c0_1 = arith.constant 0 : index
    %c0_2 = arith.constant 0 : index
    %c0_3 = arith.constant 0 : index
    %1 = vector.load %arg1[%c0_1, %c0_2, %c0_3] : memref<4x72x98xf32, #tpu.memory_space<vmem>>, vector<1x72x98xf32>
    %2 = vector.shape_cast %1 : vector<1x72x98xf32> to vector<72x98xf32>
    %cst = arith.constant dense<0.000000e+00> : vector<8x98xf32>
    %3 = tpu.matmul %0, %2, %cst {dimension_numbers = #tpu.dot_dimension_numbers<[1], [0], [0], [1], [0, 0, 1, 1], [], []>} : vector<8x72xf32>, vector<72x98xf32>, vector<8x98xf32> -> vector<8x98xf32>
    %c1 = arith.constant 1 : index
    %c0_4 = arith.constant 0 : index
    %c0_5 = arith.constant 0 : index
    %4 = vector.load %arg1[%c1, %c0_4, %c0_5] : memref<4x72x98xf32, #tpu.memory_space<vmem>>, vector<1x72x98xf32>
    %5 = vector.shape_cast %4 : vector<1x72x98xf32> to vector<72x98xf32>
    %cst_6 = arith.constant dense<0.000000e+00> : vector<8x98xf32>
    %6 = tpu.matmul %0, %5, %cst_6 {dimension_numbers = #tpu.dot_dimension_numbers<[1], [0], [0], [1], [0, 0, 1, 1], [], []>} : vector<8x72xf32>, vector<72x98xf32>, vector<8x98xf32> -> vector<8x98xf32>
    %7 = arith.maximumf %3, %6 : vector<8x98xf32>
    %c2 = arith.constant 2 : index
    %c0_7 = arith.constant 0 : index
    %c0_8 = arith.constant 0 : index
    %8 = vector.load %arg1[%c2, %c0_7, %c0_8] : memref<4x72x98xf32, #tpu.memory_space<vmem>>, vector<1x72x98xf32>
    %9 = vector.shape_cast %8 : vector<1x72x98xf32> to vector<72x98xf32>
    %cst_9 = arith.constant dense<0.000000e+00> : vector<8x98xf32>
    %10 = tpu.matmul %0, %9, %cst_9 {dimension_numbers = #tpu.dot_dimension_numbers<[1], [0], [0], [1], [0, 0, 1, 1], [], []>} : vector<8x72xf32>, vector<72x98xf32>, vector<8x98xf32> -> vector<8x98xf32>
    %11 = arith.maximumf %7, %10 : vector<8x98xf32>
    %c3 = arith.constant 3 : index
    %c0_10 = arith.constant 0 : index
    %c0_11 = arith.constant 0 : index
    %12 = vector.load %arg1[%c3, %c0_10, %c0_11] : memref<4x72x98xf32, #tpu.memory_space<vmem>>, vector<1x72x98xf32>
    %13 = vector.shape_cast %12 : vector<1x72x98xf32> to vector<72x98xf32>
    %cst_12 = arith.constant dense<0.000000e+00> : vector<8x98xf32>
    %14 = tpu.matmul %0, %13, %cst_12 {dimension_numbers = #tpu.dot_dimension_numbers<[1], [0], [0], [1], [0, 0, 1, 1], [], []>} : vector<8x72xf32>, vector<72x98xf32>, vector<8x98xf32> -> vector<8x98xf32>
    %15 = arith.maximumf %11, %14 : vector<8x98xf32>
    %c0_13 = arith.constant 0 : index
    %c0_14 = arith.constant 0 : index
    %16 = vector.load %arg3[%c0_13, %c0_14] : memref<8x1xf32, #tpu.memory_space<vmem>>, vector<8x1xf32>
    %17 = vector.broadcast %16 : vector<8x1xf32> to vector<8x98xf32>
    %18 = arith.addf %15, %17 : vector<8x98xf32>
    %cst_15 = arith.constant 0.000000e+00 : f32
    %19 = vector.broadcast %cst_15 : f32 to vector<8x98xf32>
    %20 = arith.maximumf %18, %19 : vector<8x98xf32>
    %c0_16 = arith.constant 0 : index
    %c0_17 = arith.constant 0 : index
    %21 = vector.load %arg4[%c0_16, %c0_17] : memref<8x98xf32, #tpu.memory_space<vmem>>, vector<8x98xf32>
    tpu.vector_store %arg4[%c0_16, %c0_17], %20 {strides = array<i32>} : memref<8x98xf32, #tpu.memory_space<vmem>>, vector<8x98xf32>,
    return
  }
  func.func @transform_0(%arg0: i32) -> (i32, i32, i32) {
    %c0_i32 = arith.constant 0 : i32
    %c0_i32_0 = arith.constant 0 : i32
    %c0_i32_1 = arith.constant 0 : i32
    %c0_i32_2 = arith.constant 0 : i32
    return %c0_i32, %c0_i32_0, %c0_i32_1 : i32, i32, i32
  }
  func.func @transform_1(%arg0: i32) -> (i32, i32) {
    %c0_i32 = arith.constant 0 : i32
    %c0_i32_0 = arith.constant 0 : i32
    %c0_i32_1 = arith.constant 0 : i32
    return %c0_i32, %c0_i32_0 : i32, i32
  }
  func.func @transform_2(%arg0: i32) -> (i32, i32) {
    %c0_i32 = arith.constant 0 : i32
    %c0_i32_0 = arith.constant 0 : i32
    %c0_i32_1 = arith.constant 0 : i32
    return %c0_i32, %c0_i32_0 : i32, i32
  }
  func.func @transform_3(%arg0: i32) -> (i32, i32) {
    %c0_i32 = arith.constant 0 : i32
    %c0_i32_0 = arith.constant 0 : i32
    %c0_i32_1 = arith.constant 0 : i32
    return %c0_i32, %c0_i32_0 : i32, i32
  }
}

</mosaic_0001>

<llo_original>
// kernel: _lambda_.3
$region0: #{_lambda_.3}
  #allocation0 [shape = 'u32[]', space=smem, size = 0x4, offset = 0x4, fixed_abs, tag = 'smem constant byte address 0x4 - core index']
  #allocation1 [shape = 'u32[144,128]{1,0:T(1,128)}', space=vmem, size = 0x12000, scoped, tag = 'internal scratch']
  %s0 = inlined_call_operand.vmem [shape: f32[4,9,392], index: 0, kind: input, shape index: {}]
  %s1 = inlined_call_operand.vmem [shape: f32[8,9], index: 1, kind: input, shape index: {}]
  %s2 = inlined_call_operand.vmem [shape: f32[8,1], index: 2, kind: input, shape index: {}]
  %s3 = inlined_call_operand.vmem [shape: f32[8,392], index: 3, kind: output, shape index: {}]
  %s4 = sld [smem:[#allocation0]]
  $region22: #{_lambda_.3} parent=0
    _
  %s6 = ssub.s32 1, %s4
  %s7 = scalar_select 0, %s6, %s4
  // Predicated region
  $region2: #{_lambda_.3} parent=0 // pred_check
    _
  $region3: #{_lambda_.3} parent=0 // pred_check_branch
    %9 = sbr.rel (0) target = $region5
  $region4: #{_lambda_.3} parent=0 // pred_region
    _
  $region5: #{_lambda_.3} parent=0 // pred_fallthru
    _
  // Predicated region
  $region6: #{_lambda_.3} parent=0 // pred_check
    _
  $region7: #{_lambda_.3} parent=0 // pred_check_branch
    %11 = sbr.rel (0) target = $region9
  $region8: #{_lambda_.3} parent=0 // pred_region
    _
  $region9: #{_lambda_.3} parent=0 // pred_fallthru
    _
  // Predicated region
  $region10: #{_lambda_.3} parent=0 // pred_check
    _
  $region11: #{_lambda_.3} parent=0 // pred_check_branch
    %13 = sbr.rel (0) target = $region13
  $region12: #{_lambda_.3} parent=0 // pred_region
    _
  $region13: #{_lambda_.3} parent=0 // pred_fallthru
    _
  %v14 = vld [vmem:[%s1] sm:$0xff]
  %v15 = vld [vmem:[%s0] sm:$0xff]
  %v16 = vld [vmem:[%s0 + $0x8] sm:$0xff]
  %v17 = vld [vmem:[%s0 + $0x10] sm:$0xff]
  %v18 = vld [vmem:[%s0 + $0x18] sm:$0xff]
  %v19 = vld [vmem:[%s0 + $0x20] sm:$0x1]
  %v20 = vld [vmem:[%s0 + $0x28] sm:$0x1]
  %v21 = vld [vmem:[%s0 + $0x30] sm:$0x1]
  %v22 = vld [vmem:[%s0 + $0x38] sm:$0x1]
  %vm23 = vcmask 72704
  %v25 = vsel %vm23, %v14, 0
  %vm27 = vcmask 1040384
  %v29 = vsel %vm27, %v19, 0
  %v32 = vsel %vm27, %v20, 0
  %v35 = vsel %vm27, %v21, 0
  %v38 = vsel %vm27, %v22, 0
  %40 = vmatprep.subr.mxu0 %v16
  %41 = vmatpush1.msra.mxu0 %v15
  %42 = vmatprep.subr.mxu0 %v32
  %43 = vmatpush1.msra.mxu0 %v29
  %44 = vmatprep.subr.mxu0 0.0
  %45 = vmatpush1.msra.mxu0 0.0
  %46 = vmatprep.subr.mxu0 0.0
  %47 = vmatpush1.msra.mxu0 0.0
  %48 = vmatprep.subr.mxu0 0.0
  %49 = vmatpush1.msra.mxu0 0.0
  %50 = vmatprep.subr.mxu0 0.0
  %51 = vmatpush1.msra.mxu0 0.0
  %52 = vmatprep.subr.mxu0 0.0
  %53 = vmatpush1.msra.mxu0 0.0
  %54 = vmatprep.subr.mxu0 0.0
  %55 = vmatpush1.msra.mxu0 0.0
  %56 = vmatprep.subr.mxu0 0.0
  %57 = vmatpush1.msra.mxu0 0.0
  %58 = vmatprep.subr.mxu0 0.0
  %59 = vmatpush1.msra.mxu0 0.0
  %60 = vmatprep.subr.mxu0 0.0
  %61 = vmatpush1.msra.mxu0 0.0
  %62 = vmatprep.subr.mxu0 0.0
  %63 = vmatpush1.msra.mxu0 0.0
  %64 = vmatprep.subr.mxu0 0.0
  %65 = vmatpush1.msra.mxu0 0.0
  %66 = vmatprep.subr.mxu0 0.0
  %67 = vmatpush1.msra.mxu0 0.0
  %68 = vmatprep.subr.mxu0 0.0
  %69 = vmatpush1.msra.mxu0 0.0
  %70 = vmatprep.subr.mxu0 0.0
  %71 = vmatpush1.msra.mxu0 0.0
  %72 = vmatprep.subr.mxu0 0.0
  %73 = vmatpush1.msra.mxu0 0.0
  %74 = vmatprep.subr.mxu0 0.0
  %75 = vmatpush1.msra.mxu0 0.0
  %76 = vmatprep.subr.mxu0 0.0
  %77 = vmatpush1.msra.mxu0 0.0
  %78 = vmatprep.subr.mxu0 0.0
  %79 = vmatpush1.msra.mxu0 0.0
  %80 = vmatprep.subr.mxu0 0.0
  %81 = vmatpush1.msra.mxu0 0.0
  %82 = vmatprep.subr.mxu0 0.0
  %83 = vmatpush1.msra.mxu0 0.0
  %84 = vmatprep.subr.mxu0 0.0
  %85 = vmatpush1.msra.mxu0 0.0
  %86 = vmatprep.subr.mxu0 0.0
  %87 = vmatpush1.msra.mxu0 0.0
  %88 = vmatprep.subr.mxu0 0.0
  %89 = vmatpush1.msra.mxu0 0.0
  %90 = vmatprep.subr.mxu0 0.0
  %91 = vmatpush1.msra.mxu0 0.0
  %92 = vmatprep.subr.mxu0 0.0
  %93 = vmatpush1.msra.mxu0 0.0
  %94 = vmatprep.subr.mxu0 0.0
  %95 = vmatpush1.msra.mxu0 0.0
  %96 = vmatprep.subr.mxu0 0.0
  %97 = vmatpush1.msra.mxu0 0.0
  %98 = vmatprep.subr.mxu0 0.0
  %99 = vmatpush1.msra.mxu0 0.0
  %100 = vmatprep.subr.mxu0 0.0
  %101 = vmatpush1.msra.mxu0 0.0
  %102 = vmatprep.subr.mxu0 0.0
  %103 = vmatpush1.msra.mxu0 0.0
  %104 = vmatprep.mubr.f32.mxu0 0.0
  %105 = vmatmul.mubr.f32.gmra.mrb[0].mxu0 %v25
  %v106 = vpop.f32.mrb[0].mxu0
  %v107 = vadd.f32 0.0, %v106
  %v108 = vpop.f32.mrb[0].mxu0
  %v109 = vadd.f32 0.0, %v108
  %110 = vdwg.mxu0
  %111 = vmatprep.subr.mxu0 %v18
  %112 = vmatpush1.msra.mxu0 %v17
  %113 = vmatprep.subr.mxu0 %v38
  %114 = vmatpush1.msra.mxu0 %v35
  %115 = vmatprep.subr.mxu0 0.0
  %116 = vmatpush1.msra.mxu0 0.0
  %117 = vmatprep.subr.mxu0 0.0
  %118 = vmatpush1.msra.mxu0 0.0
  %119 = vmatprep.subr.mxu0 0.0
  %120 = vmatpush1.msra.mxu0 0.0
  %121 = vmatprep.subr.mxu0 0.0
  %122 = vmatpush1.msra.mxu0 0.0
  %123 = vmatprep.subr.mxu0 0.0
  %124 = vmatpush1.msra.mxu0 0.0
  %125 = vmatprep.subr.mxu0 0.0
  %126 = vmatpush1.msra.mxu0 0.0
  %127 = vmatprep.subr.mxu0 0.0
  %128 = vmatpush1.msra.mxu0 0.0
  %129 = vmatprep.subr.mxu0 0.0
  %130 = vmatpush1.msra.mxu0 0.0
  %131 = vmatprep.subr.mxu0 0.0
  %132 = vmatpush1.msra.mxu0 0.0
  %133 = vmatprep.subr.mxu0 0.0
  %134 = vmatpush1.msra.mxu0 0.0
  %135 = vmatprep.subr.mxu0 0.0
  %136 = vmatpush1.msra.mxu0 0.0
  %137 = vmatprep.subr.mxu0 0.0
  %138 = vmatpush1.msra.mxu0 0.0
  %139 = vmatprep.subr.mxu0 0.0
  %140 = vmatpush1.msra.mxu0 0.0
  %141 = vmatprep.subr.mxu0 0.0
  %142 = vmatpush1.msra.mxu0 0.0
  %143 = vmatprep.subr.mxu0 0.0
  %144 = vmatpush1.msra.mxu0 0.0
  %145 = vmatprep.subr.mxu0 0.0
  %146 = vmatpush1.msra.mxu0 0.0
  %147 = vmatprep.subr.mxu0 0.0
  %148 = vmatpush1.msra.mxu0 0.0
  %149 = vmatprep.subr.mxu0 0.0
  %150 = vmatpush1.msra.mxu0 0.0
  %151 = vmatprep.subr.mxu0 0.0
  %152 = vmatpush1.msra.mxu0 0.0
  %153 = vmatprep.subr.mxu0 0.0
  %154 = vmatpush1.msra.mxu0 0.0
  %155 = vmatprep.subr.mxu0 0.0
  %156 = vmatpush1.msra.mxu0 0.0
  %157 = vmatprep.subr.mxu0 0.0
  %158 = vmatpush1.msra.mxu0 0.0
  %159 = vmatprep.subr.mxu0 0.0
  %160 = vmatpush1.msra.mxu0 0.0
  %161 = vmatprep.subr.mxu0 0.0
  %162 = vmatpush1.msra.mxu0 0.0
  %163 = vmatprep.subr.mxu0 0.0
  %164 = vmatpush1.msra.mxu0 0.0
  %165 = vmatprep.subr.mxu0 0.0
  %166 = vmatpush1.msra.mxu0 0.0
  %167 = vmatprep.subr.mxu0 0.0
  %168 = vmatpush1.msra.mxu0 0.0
  %169 = vmatprep.subr.mxu0 0.0
  %170 = vmatpush1.msra.mxu0 0.0
  %171 = vmatprep.subr.mxu0 0.0
  %172 = vmatpush1.msra.mxu0 0.0
  %173 = vmatprep.subr.mxu0 0.0
  %174 = vmatpush1.msra.mxu0 0.0
  %175 = vmatprep.mubr.f32.mxu0 0.0
  %176 = vmatmul.mubr.f32.gmra.mrb[0].mxu0 %v25
  %v177 = vpop.f32.mrb[0].mxu0
  %v178 = vadd.f32 0.0, %v177
  %v179 = vpop.f32.mrb[0].mxu0
  %v180 = vadd.f32 0.0, %v179
  %181 = vdwg.mxu0
  %s182 = scalar_lea.vmem %s0, 64
  %v183 = vld [vmem:[%s182] sm:$0xff]
  %v184 = vld [vmem:[%s182 + $0x8] sm:$0xff]
  %v185 = vld [vmem:[%s182 + $0x10] sm:$0xff]
  %v186 = vld [vmem:[%s182 + $0x18] sm:$0xff]
  %v187 = vld [vmem:[%s182 + $0x20] sm:$0x1]
  %v188 = vld [vmem:[%s182 + $0x28] sm:$0x1]
  %v189 = vld [vmem:[%s182 + $0x30] sm:$0x1]
  %v190 = vld [vmem:[%s182 + $0x38] sm:$0x1]
  %v192 = vsel %vm27, %v187, 0
  %v195 = vsel %vm27, %v188, 0
  %v198 = vsel %vm27, %v189, 0
  %v201 = vsel %vm27, %v190, 0
  %203 = vmatprep.subr.mxu0 %v184
  %204 = vmatpush1.msra.mxu0 %v183
  %205 = vmatprep.subr.mxu0 %v195
  %206 = vmatpush1.msra.mxu0 %v192
  %207 = vmatprep.subr.mxu0 0.0
  %208 = vmatpush1.msra.mxu0 0.0
  %209 = vmatprep.subr.mxu0 0.0
  %210 = vmatpush1.msra.mxu0 0.0
  %211 = vmatprep.subr.mxu0 0.0
  %212 = vmatpush1.msra.mxu0 0.0
  %213 = vmatprep.subr.mxu0 0.0
  %214 = vmatpush1.msra.mxu0 0.0
  %215 = vmatprep.subr.mxu0 0.0
  %216 = vmatpush1.msra.mxu0 0.0
  %217 = vmatprep.subr.mxu0 0.0
  %218 = vmatpush1.msra.mxu0 0.0
  %219 = vmatprep.subr.mxu0 0.0
  %220 = vmatpush1.msra.mxu0 0.0
  %221 = vmatprep.subr.mxu0 0.0
  %222 = vmatpush1.msra.mxu0 0.0
  %223 = vmatprep.subr.mxu0 0.0
  %224 = vmatpush1.msra.mxu0 0.0
  %225 = vmatprep.subr.mxu0 0.0
  %226 = vmatpush1.msra.mxu0 0.0
  %227 = vmatprep.subr.mxu0 0.0
  %228 = vmatpush1.msra.mxu0 0.0
  %229 = vmatprep.subr.mxu0 0.0
  %230 = vmatpush1.msra.mxu0 0.0
  %231 = vmatprep.subr.mxu0 0.0
  %232 = vmatpush1.msra.mxu0 0.0
  %233 = vmatprep.subr.mxu0 0.0
  %234 = vmatpush1.msra.mxu0 0.0
  %235 = vmatprep.subr.mxu0 0.0
  %236 = vmatpush1.msra.mxu0 0.0
  %237 = vmatprep.subr.mxu0 0.0
  %238 = vmatpush1.msra.mxu0 0.0
  %239 = vmatprep.subr.mxu0 0.0
  %240 = vmatpush1.msra.mxu0 0.0
  %241 = vmatprep.subr.mxu0 0.0
  %242 = vmatpush1.msra.mxu0 0.0
  %243 = vmatprep.subr.mxu0 0.0
  %244 = vmatpush1.msra.mxu0 0.0
  %245 = vmatprep.subr.mxu0 0.0
  %246 = vmatpush1.msra.mxu0 0.0
  %247 = vmatprep.subr.mxu0 0.0
  %248 = vmatpush1.msra.mxu0 0.0
  %249 = vmatprep.subr.mxu0 0.0
  %250 = vmatpush1.msra.mxu0 0.0
  %251 = vmatprep.subr.mxu0 0.0
  %252 = vmatpush1.msra.mxu0 0.0
  %253 = vmatprep.subr.mxu0 0.0
  %254 = vmatpush1.msra.mxu0 0.0
  %255 = vmatprep.subr.mxu0 0.0
  %256 = vmatpush1.msra.mxu0 0.0
  %257 = vmatprep.subr.mxu0 0.0
  %258 = vmatpush1.msra.mxu0 0.0
  %259 = vmatprep.subr.mxu0 0.0
  %260 = vmatpush1.msra.mxu0 0.0
  %261 = vmatprep.subr.mxu0 0.0
  %262 = vmatpush1.msra.mxu0 0.0
  %263 = vmatprep.subr.mxu0 0.0
  %264 = vmatpush1.msra.mxu0 0.0
  %265 = vmatprep.subr.mxu0 0.0
  %266 = vmatpush1.msra.mxu0 0.0
  %267 = vmatprep.mubr.f32.mxu0 0.0
  %268 = vmatmul.mubr.f32.gmra.mrb[0].mxu0 %v25
  %v269 = vpop.f32.mrb[0].mxu0
  %v270 = vadd.f32 0.0, %v269
  %v271 = vpop.f32.mrb[0].mxu0
  %v272 = vadd.f32 0.0, %v271
  %273 = vdwg.mxu0
  %274 = vmatprep.subr.mxu0 %v186
  %275 = vmatpush1.msra.mxu0 %v185
  %276 = vmatprep.subr.mxu0 %v201
  %277 = vmatpush1.msra.mxu0 %v198
  %278 = vmatprep.subr.mxu0 0.0
  %279 = vmatpush1.msra.mxu0 0.0
  %280 = vmatprep.subr.mxu0 0.0
  %281 = vmatpush1.msra.mxu0 0.0
  %282 = vmatprep.subr.mxu0 0.0
  %283 = vmatpush1.msra.mxu0 0.0
  %284 = vmatprep.subr.mxu0 0.0
  %285 = vmatpush1.msra.mxu0 0.0
  %286 = vmatprep.subr.mxu0 0.0
  %287 = vmatpush1.msra.mxu0 0.0
  %288 = vmatprep.subr.mxu0 0.0
  %289 = vmatpush1.msra.mxu0 0.0
  %290 = vmatprep.subr.mxu0 0.0
  %291 = vmatpush1.msra.mxu0 0.0
  %292 = vmatprep.subr.mxu0 0.0
  %293 = vmatpush1.msra.mxu0 0.0
  %294 = vmatprep.subr.mxu0 0.0
  %295 = vmatpush1.msra.mxu0 0.0
  %296 = vmatprep.subr.mxu0 0.0
  %297 = vmatpush1.msra.mxu0 0.0
  %298 = vmatprep.subr.mxu0 0.0
  %299 = vmatpush1.msra.mxu0 0.0
  %300 = vmatprep.subr.mxu0 0.0
  %301 = vmatpush1.msra.mxu0 0.0
  %302 = vmatprep.subr.mxu0 0.0
  %303 = vmatpush1.msra.mxu0 0.0
  %304 = vmatprep.subr.mxu0 0.0
  %305 = vmatpush1.msra.mxu0 0.0
  %306 = vmatprep.subr.mxu0 0.0
  %307 = vmatpush1.msra.mxu0 0.0
  %308 = vmatprep.subr.mxu0 0.0
  %309 = vmatpush1.msra.mxu0 0.0
  %310 = vmatprep.subr.mxu0 0.0
  %311 = vmatpush1.msra.mxu0 0.0
  %312 = vmatprep.subr.mxu0 0.0
  %313 = vmatpush1.msra.mxu0 0.0
  %314 = vmatprep.subr.mxu0 0.0
  %315 = vmatpush1.msra.mxu0 0.0
  %316 = vmatprep.subr.mxu0 0.0
  %317 = vmatpush1.msra.mxu0 0.0
  %318 = vmatprep.subr.mxu0 0.0
  %319 = vmatpush1.msra.mxu0 0.0
  %320 = vmatprep.subr.mxu0 0.0
  %321 = vmatpush1.msra.mxu0 0.0
  %322 = vmatprep.subr.mxu0 0.0
  %323 = vmatpush1.msra.mxu0 0.0
  %324 = vmatprep.subr.mxu0 0.0
  %325 = vmatpush1.msra.mxu0 0.0
  %326 = vmatprep.subr.mxu0 0.0
  %327 = vmatpush1.msra.mxu0 0.0
  %328 = vmatprep.subr.mxu0 0.0
  %329 = vmatpush1.msra.mxu0 0.0
  %330 = vmatprep.subr.mxu0 0.0
  %331 = vmatpush1.msra.mxu0 0.0
  %332 = vmatprep.subr.mxu0 0.0
  %333 = vmatpush1.msra.mxu0 0.0
  %334 = vmatprep.subr.mxu0 0.0
  %335 = vmatpush1.msra.mxu0 0.0
  %336 = vmatprep.subr.mxu0 0.0
  %337 = vmatpush1.msra.mxu0 0.0
  %338 = vmatprep.mubr.f32.mxu0 0.0
  %339 = vmatmul.mubr.f32.gmra.mrb[0].mxu0 %v25
  %v340 = vpop.f32.mrb[0].mxu0
  %v341 = vadd.f32 0.0, %v340
  %v342 = vpop.f32.mrb[0].mxu0
  %v343 = vadd.f32 0.0, %v342
  %344 = vdwg.mxu0
  %v345 = vmax.f32 %v107, %v270
  %v346 = vmax.f32 %v109, %v272
  %v347 = vmax.f32 %v178, %v341
  %v348 = vmax.f32 %v180, %v343
  %s349 = scalar_lea.vmem %s0, 128
  %v350 = vld [vmem:[%s349] sm:$0xff]
  %v351 = vld [vmem:[%s349 + $0x8] sm:$0xff]
  %v352 = vld [vmem:[%s349 + $0x10] sm:$0xff]
  %v353 = vld [vmem:[%s349 + $0x18] sm:$0xff]
  %v354 = vld [vmem:[%s349 + $0x20] sm:$0x1]
  %v355 = vld [vmem:[%s349 + $0x28] sm:$0x1]
  %v356 = vld [vmem:[%s349 + $0x30] sm:$0x1]
  %v357 = vld [vmem:[%s349 + $0x38] sm:$0x1]
  %v359 = vsel %vm27, %v354, 0
  %v362 = vsel %vm27, %v355, 0
  %v365 = vsel %vm27, %v356, 0
  %v368 = vsel %vm27, %v357, 0
  %370 = vmatprep.subr.mxu0 %v351
  %371 = vmatpush1.msra.mxu0 %v350
  %372 = vmatprep.subr.mxu0 %v362
  %373 = vmatpush1.msra.mxu0 %v359
  %374 = vmatprep.subr.mxu0 0.0
  %375 = vmatpush1.msra.mxu0 0.0
  %376 = vmatprep.subr.mxu0 0.0
  %377 = vmatpush1.msra.mxu0 0.0
  %378 = vmatprep.subr.mxu0 0.0
  %379 = vmatpush1.msra.mxu0 0.0
  %380 = vmatprep.subr.mxu0 0.0
  %381 = vmatpush1.msra.mxu0 0.0
  %382 = vmatprep.subr.mxu0 0.0
  %383 = vmatpush1.msra.mxu0 0.0
  %384 = vmatprep.subr.mxu0 0.0
  %385 = vmatpush1.msra.mxu0 0.0
  %386 = vmatprep.subr.mxu0 0.0
  %387 = vmatpush1.msra.mxu0 0.0
  %388 = vmatprep.subr.mxu0 0.0
  %389 = vmatpush1.msra.mxu0 0.0
  %390 = vmatprep.subr.mxu0 0.0
  %391 = vmatpush1.msra.mxu0 0.0
  %392 = vmatprep.subr.mxu0 0.0
  %393 = vmatpush1.msra.mxu0 0.0
  %394 = vmatprep.subr.mxu0 0.0
  %395 = vmatpush1.msra.mxu0 0.0
  %396 = vmatprep.subr.mxu0 0.0
  %397 = vmatpush1.msra.mxu0 0.0
  %398 = vmatprep.subr.mxu0 0.0
  %399 = vmatpush1.msra.mxu0 0.0
  %400 = vmatprep.subr.mxu0 0.0
  %401 = vmatpush1.msra.mxu0 0.0
  %402 = vmatprep.subr.mxu0 0.0
  %403 = vmatpush1.msra.mxu0 0.0
  %404 = vmatprep.subr.mxu0 0.0
  %405 = vmatpush1.msra.mxu0 0.0
  %406 = vmatprep.subr.mxu0 0.0
  %407 = vmatpush1.msra.mxu0 0.0
  %408 = vmatprep.subr.mxu0 0.0
  %409 = vmatpush1.msra.mxu0 0.0
  %410 = vmatprep.subr.mxu0 0.0
  %411 = vmatpush1.msra.mxu0 0.0
  %412 = vmatprep.subr.mxu0 0.0
  %413 = vmatpush1.msra.mxu0 0.0
  %414 = vmatprep.subr.mxu0 0.0
  %415 = vmatpush1.msra.mxu0 0.0
  %416 = vmatprep.subr.mxu0 0.0
  %417 = vmatpush1.msra.mxu0 0.0
  %418 = vmatprep.subr.mxu0 0.0
  %419 = vmatpush1.msra.mxu0 0.0
  %420 = vmatprep.subr.mxu0 0.0
  %421 = vmatpush1.msra.mxu0 0.0
  %422 = vmatprep.subr.mxu0 0.0
  %423 = vmatpush1.msra.mxu0 0.0
  %424 = vmatprep.subr.mxu0 0.0
  %425 = vmatpush1.msra.mxu0 0.0
  %426 = vmatprep.subr.mxu0 0.0
  %427 = vmatpush1.msra.mxu0 0.0
  %428 = vmatprep.subr.mxu0 0.0
  %429 = vmatpush1.msra.mxu0 0.0
  %430 = vmatprep.subr.mxu0 0.0
  %431 = vmatpush1.msra.mxu0 0.0
  %432 = vmatprep.subr.mxu0 0.0
  %433 = vmatpush1.msra.mxu0 0.0
  %434 = vmatprep.mubr.f32.mxu0 0.0
  %435 = vmatmul.mubr.f32.gmra.mrb[0].mxu0 %v25
  %v436 = vpop.f32.mrb[0].mxu0
  %v437 = vadd.f32 0.0, %v436
  %v438 = vpop.f32.mrb[0].mxu0
  %v439 = vadd.f32 0.0, %v438
  %440 = vdwg.mxu0
  %441 = vmatprep.subr.mxu0 %v353
  %442 = vmatpush1.msra.mxu0 %v352
  %443 = vmatprep.subr.mxu0 %v368
  %444 = vmatpush1.msra.mxu0 %v365
  %445 = vmatprep.subr.mxu0 0.0
  %446 = vmatpush1.msra.mxu0 0.0
  %447 = vmatprep.subr.mxu0 0.0
  %448 = vmatpush1.msra.mxu0 0.0
  %449 = vmatprep.subr.mxu0 0.0
  %450 = vmatpush1.msra.mxu0 0.0
  %451 = vmatprep.subr.mxu0 0.0
  %452 = vmatpush1.msra.mxu0 0.0
  %453 = vmatprep.subr.mxu0 0.0
  %454 = vmatpush1.msra.mxu0 0.0
  %455 = vmatprep.subr.mxu0 0.0
  %456 = vmatpush1.msra.mxu0 0.0
  %457 = vmatprep.subr.mxu0 0.0
  %458 = vmatpush1.msra.mxu0 0.0
  %459 = vmatprep.subr.mxu0 0.0
  %460 = vmatpush1.msra.mxu0 0.0
  %461 = vmatprep.subr.mxu0 0.0
  %462 = vmatpush1.msra.mxu0 0.0
  %463 = vmatprep.subr.mxu0 0.0
  %464 = vmatpush1.msra.mxu0 0.0
  %465 = vmatprep.subr.mxu0 0.0
  %466 = vmatpush1.msra.mxu0 0.0
  %467 = vmatprep.subr.mxu0 0.0
  %468 = vmatpush1.msra.mxu0 0.0
  %469 = vmatprep.subr.mxu0 0.0
  %470 = vmatpush1.msra.mxu0 0.0
  %471 = vmatprep.subr.mxu0 0.0
  %472 = vmatpush1.msra.mxu0 0.0
  %473 = vmatprep.subr.mxu0 0.0
  %474 = vmatpush1.msra.mxu0 0.0
  %475 = vmatprep.subr.mxu0 0.0
  %476 = vmatpush1.msra.mxu0 0.0
  %477 = vmatprep.subr.mxu0 0.0
  %478 = vmatpush1.msra.mxu0 0.0
  %479 = vmatprep.subr.mxu0 0.0
  %480 = vmatpush1.msra.mxu0 0.0
  %481 = vmatprep.subr.mxu0 0.0
  %482 = vmatpush1.msra.mxu0 0.0
  %483 = vmatprep.subr.mxu0 0.0
  %484 = vmatpush1.msra.mxu0 0.0
  %485 = vmatprep.subr.mxu0 0.0
  %486 = vmatpush1.msra.mxu0 0.0
  %487 = vmatprep.subr.mxu0 0.0
  %488 = vmatpush1.msra.mxu0 0.0
  %489 = vmatprep.subr.mxu0 0.0
  %490 = vmatpush1.msra.mxu0 0.0
  %491 = vmatprep.subr.mxu0 0.0
  %492 = vmatpush1.msra.mxu0 0.0
  %493 = vmatprep.subr.mxu0 0.0
  %494 = vmatpush1.msra.mxu0 0.0
  %495 = vmatprep.subr.mxu0 0.0
  %496 = vmatpush1.msra.mxu0 0.0
  %497 = vmatprep.subr.mxu0 0.0
  %498 = vmatpush1.msra.mxu0 0.0
  %499 = vmatprep.subr.mxu0 0.0
  %500 = vmatpush1.msra.mxu0 0.0
  %501 = vmatprep.subr.mxu0 0.0
  %502 = vmatpush1.msra.mxu0 0.0
  %503 = vmatprep.subr.mxu0 0.0
  %504 = vmatpush1.msra.mxu0 0.0
  %505 = vmatprep.mubr.f32.mxu0 0.0
  %506 = vmatmul.mubr.f32.gmra.mrb[0].mxu0 %v25
  %v507 = vpop.f32.mrb[0].mxu0
  %v508 = vadd.f32 0.0, %v507
  %v509 = vpop.f32.mrb[0].mxu0
  %v510 = vadd.f32 0.0, %v509
  %511 = vdwg.mxu0
  %v512 = vmax.f32 %v345, %v437
  %v513 = vmax.f32 %v346, %v439
  %v514 = vmax.f32 %v347, %v508
  %v515 = vmax.f32 %v348, %v510
  %s516 = scalar_lea.vmem %s0, 192
  %v517 = vld [vmem:[%s516] sm:$0xff]
  %v518 = vld [vmem:[%s516 + $0x8] sm:$0xff]
  %v519 = vld [vmem:[%s516 + $0x10] sm:$0xff]
  %v520 = vld [vmem:[%s516 + $0x18] sm:$0xff]
  %v521 = vld [vmem:[%s516 + $0x20] sm:$0x1]
  %v522 = vld [vmem:[%s516 + $0x28] sm:$0x1]
  %v523 = vld [vmem:[%s516 + $0x30] sm:$0x1]
  %v524 = vld [vmem:[%s516 + $0x38] sm:$0x1]
  %v526 = vsel %vm27, %v521, 0
  %v529 = vsel %vm27, %v522, 0
  %v532 = vsel %vm27, %v523, 0
  %v535 = vsel %vm27, %v524, 0
  %537 = vmatprep.subr.mxu0 %v518
  %538 = vmatpush1.msra.mxu0 %v517
  %539 = vmatprep.subr.mxu0 %v529
  %540 = vmatpush1.msra.mxu0 %v526
  %541 = vmatprep.subr.mxu0 0.0
  %542 = vmatpush1.msra.mxu0 0.0
  %543 = vmatprep.subr.mxu0 0.0
  %544 = vmatpush1.msra.mxu0 0.0
  %545 = vmatprep.subr.mxu0 0.0
  %546 = vmatpush1.msra.mxu0 0.0
  %547 = vmatprep.subr.mxu0 0.0
  %548 = vmatpush1.msra.mxu0 0.0
  %549 = vmatprep.subr.mxu0 0.0
  %550 = vmatpush1.msra.mxu0 0.0
  %551 = vmatprep.subr.mxu0 0.0
  %552 = vmatpush1.msra.mxu0 0.0
  %553 = vmatprep.subr.mxu0 0.0
  %554 = vmatpush1.msra.mxu0 0.0
  %555 = vmatprep.subr.mxu0 0.0
  %556 = vmatpush1.msra.mxu0 0.0
  %557 = vmatprep.subr.mxu0 0.0
  %558 = vmatpush1.msra.mxu0 0.0
  %559 = vmatprep.subr.mxu0 0.0
  %560 = vmatpush1.msra.mxu0 0.0
  %561 = vmatprep.subr.mxu0 0.0
  %562 = vmatpush1.msra.mxu0 0.0
  %563 = vmatprep.subr.mxu0 0.0
  %564 = vmatpush1.msra.mxu0 0.0
  %565 = vmatprep.subr.mxu0 0.0
  %566 = vmatpush1.msra.mxu0 0.0
  %567 = vmatprep.subr.mxu0 0.0
  %568 = vmatpush1.msra.mxu0 0.0
  %569 = vmatprep.subr.mxu0 0.0
  %570 = vmatpush1.msra.mxu0 0.0
  %571 = vmatprep.subr.mxu0 0.0
  %572 = vmatpush1.msra.mxu0 0.0
  %573 = vmatprep.subr.mxu0 0.0
  %574 = vmatpush1.msra.mxu0 0.0
  %575 = vmatprep.subr.mxu0 0.0
  %576 = vmatpush1.msra.mxu0 0.0
  %577 = vmatprep.subr.mxu0 0.0
  %578 = vmatpush1.msra.mxu0 0.0
  %579 = vmatprep.subr.mxu0 0.0
  %580 = vmatpush1.msra.mxu0 0.0
  %581 = vmatprep.subr.mxu0 0.0
  %582 = vmatpush1.msra.mxu0 0.0
  %583 = vmatprep.subr.mxu0 0.0
  %584 = vmatpush1.msra.mxu0 0.0
  %585 = vmatprep.subr.mxu0 0.0
  %586 = vmatpush1.msra.mxu0 0.0
  %587 = vmatprep.subr.mxu0 0.0
  %588 = vmatpush1.msra.mxu0 0.0
  %589 = vmatprep.subr.mxu0 0.0
  %590 = vmatpush1.msra.mxu0 0.0
  %591 = vmatprep.subr.mxu0 0.0
  %592 = vmatpush1.msra.mxu0 0.0
  %593 = vmatprep.subr.mxu0 0.0
  %594 = vmatpush1.msra.mxu0 0.0
  %595 = vmatprep.subr.mxu0 0.0
  %596 = vmatpush1.msra.mxu0 0.0
  %597 = vmatprep.subr.mxu0 0.0
  %598 = vmatpush1.msra.mxu0 0.0
  %599 = vmatprep.subr.mxu0 0.0
  %600 = vmatpush1.msra.mxu0 0.0
  %601 = vmatprep.mubr.f32.mxu0 0.0
  %602 = vmatmul.mubr.f32.gmra.mrb[0].mxu0 %v25
  %v603 = vpop.f32.mrb[0].mxu0
  %v604 = vadd.f32 0.0, %v603
  %v605 = vpop.f32.mrb[0].mxu0
  %v606 = vadd.f32 0.0, %v605
  %607 = vdwg.mxu0
  %608 = vmatprep.subr.mxu0 %v520
  %609 = vmatpush1.msra.mxu0 %v519
  %610 = vmatprep.subr.mxu0 %v535
  %611 = vmatpush1.msra.mxu0 %v532
  %612 = vmatprep.subr.mxu0 0.0
  %613 = vmatpush1.msra.mxu0 0.0
  %614 = vmatprep.subr.mxu0 0.0
  %615 = vmatpush1.msra.mxu0 0.0
  %616 = vmatprep.subr.mxu0 0.0
  %617 = vmatpush1.msra.mxu0 0.0
  %618 = vmatprep.subr.mxu0 0.0
  %619 = vmatpush1.msra.mxu0 0.0
  %620 = vmatprep.subr.mxu0 0.0
  %621 = vmatpush1.msra.mxu0 0.0
  %622 = vmatprep.subr.mxu0 0.0
  %623 = vmatpush1.msra.mxu0 0.0
  %624 = vmatprep.subr.mxu0 0.0
  %625 = vmatpush1.msra.mxu0 0.0
  %626 = vmatprep.subr.mxu0 0.0
  %627 = vmatpush1.msra.mxu0 0.0
  %628 = vmatprep.subr.mxu0 0.0
  %629 = vmatpush1.msra.mxu0 0.0
  %630 = vmatprep.subr.mxu0 0.0
  %631 = vmatpush1.msra.mxu0 0.0
  %632 = vmatprep.subr.mxu0 0.0
  %633 = vmatpush1.msra.mxu0 0.0
  %634 = vmatprep.subr.mxu0 0.0
  %635 = vmatpush1.msra.mxu0 0.0
  %636 = vmatprep.subr.mxu0 0.0
  %637 = vmatpush1.msra.mxu0 0.0
  %638 = vmatprep.subr.mxu0 0.0
  %639 = vmatpush1.msra.mxu0 0.0
  %640 = vmatprep.subr.mxu0 0.0
  %641 = vmatpush1.msra.mxu0 0.0
  %642 = vmatprep.subr.mxu0 0.0
  %643 = vmatpush1.msra.mxu0 0.0
  %644 = vmatprep.subr.mxu0 0.0
  %645 = vmatpush1.msra.mxu0 0.0
  %646 = vmatprep.subr.mxu0 0.0
  %647 = vmatpush1.msra.mxu0 0.0
  %648 = vmatprep.subr.mxu0 0.0
  %649 = vmatpush1.msra.mxu0 0.0
  %650 = vmatprep.subr.mxu0 0.0
  %651 = vmatpush1.msra.mxu0 0.0
  %652 = vmatprep.subr.mxu0 0.0
  %653 = vmatpush1.msra.mxu0 0.0
  %654 = vmatprep.subr.mxu0 0.0
  %655 = vmatpush1.msra.mxu0 0.0
  %656 = vmatprep.subr.mxu0 0.0
  %657 = vmatpush1.msra.mxu0 0.0
  %658 = vmatprep.subr.mxu0 0.0
  %659 = vmatpush1.msra.mxu0 0.0
  %660 = vmatprep.subr.mxu0 0.0
  %661 = vmatpush1.msra.mxu0 0.0
  %662 = vmatprep.subr.mxu0 0.0
  %663 = vmatpush1.msra.mxu0 0.0
  %664 = vmatprep.subr.mxu0 0.0
  %665 = vmatpush1.msra.mxu0 0.0
  %666 = vmatprep.subr.mxu0 0.0
  %667 = vmatpush1.msra.mxu0 0.0
  %668 = vmatprep.subr.mxu0 0.0
  %669 = vmatpush1.msra.mxu0 0.0
  %670 = vmatprep.subr.mxu0 0.0
  %671 = vmatpush1.msra.mxu0 0.0
  %672 = vmatprep.mubr.f32.mxu0 0.0
  %673 = vmatmul.mubr.f32.gmra.mrb[0].mxu0 %v25
  %v674 = vpop.f32.mrb[0].mxu0
  %v675 = vadd.f32 0.0, %v674
  %v676 = vpop.f32.mrb[0].mxu0
  %v677 = vadd.f32 0.0, %v676
  %678 = vdwg.mxu0
  %v679 = vmax.f32 %v512, %v604
  %v680 = vmax.f32 %v513, %v606
  %v681 = vmax.f32 %v514, %v675
  %v682 = vmax.f32 %v515, %v677
  %v683 = vld [vmem:[%s2] sm:$0xff]
  %685 = vset.pattern.permute.xlu0 0
  %686 = vperm.xlu0 %685, %v683
  %v687 = vpop.permute.xlu0 %686
  %v689 = vadd.f32 %v679, %v687
  %v690 = vadd.f32 %v680, %v687
  %v691 = vadd.f32 %v681, %v687
  %v692 = vadd.f32 %v682, %v687
  %v693 = vmax.f32 %v689, 0.0
  %v694 = vmax.f32 %v690, 0.0
  %v695 = vmax.f32 %v691, 0.0
  %v696 = vmax.f32 %v692, 0.0
  %697 = vst [vmem:[%s3] sm:$0xff] %v693
  %698 = vst [vmem:[%s3 + $0x8] sm:$0xff] %v694
  %699 = vst [vmem:[%s3 + $0x10] sm:$0xff] %v695
  %vm700 = vcmask 64512
  %701 = vst.msk [vmem:[%s3 + $0x18] sm:$0xff] %vm700, %v696
  // Predicated region
  $region14: #{_lambda_.3} parent=0 // pred_check
    _
  $region15: #{_lambda_.3} parent=0 // pred_check_branch
    %703 = sbr.rel (0) target = $region17
  $region16: #{_lambda_.3} parent=0 // pred_region
    _
  $region17: #{_lambda_.3} parent=0 // pred_fallthru
    _
  // Predicated region
  $region18: #{_lambda_.3} parent=0 // pred_check
    _
  $region19: #{_lambda_.3} parent=0 // pred_check_branch
    %705 = sbr.rel (0) target = $region21
  $region20: #{_lambda_.3} parent=0 // pred_region
    _
  $region21: #{_lambda_.3} parent=0 // pred_fallthru
    _

// kernel: _lambda_.4
$region0: #{_lambda_.4}
  #allocation0 [shape = 'u32[]', space=smem, size = 0x4, offset = 0x4, fixed_abs, tag = 'smem constant byte address 0x4 - core index']
  #allocation1 [shape = 'u32[144,128]{1,0:T(1,128)}', space=vmem, size = 0x12000, scoped, tag = 'internal scratch']
  %s0 = inlined_call_operand.vmem [shape: f32[4,72,98], index: 0, kind: input, shape index: {}]
  %s1 = inlined_call_operand.vmem [shape: f32[8,72], index: 1, kind: input, shape index: {}]
  %s2 = inlined_call_operand.vmem [shape: f32[8,1], index: 2, kind: input, shape index: {}]
  %s3 = inlined_call_operand.vmem [shape: f32[8,98], index: 3, kind: output, shape index: {}]
  %s4 = sld [smem:[#allocation0]]
  $region22: #{_lambda_.4} parent=0
    _
  %s6 = ssub.s32 1, %s4
  %s7 = scalar_select 0, %s6, %s4
  // Predicated region
  $region2: #{_lambda_.4} parent=0 // pred_check
    _
  $region3: #{_lambda_.4} parent=0 // pred_check_branch
    %9 = sbr.rel (0) target = $region5
  $region4: #{_lambda_.4} parent=0 // pred_region
    _
  $region5: #{_lambda_.4} parent=0 // pred_fallthru
    _
  // Predicated region
  $region6: #{_lambda_.4} parent=0 // pred_check
    _
  $region7: #{_lambda_.4} parent=0 // pred_check_branch
    %11 = sbr.rel (0) target = $region9
  $region8: #{_lambda_.4} parent=0 // pred_region
    _
  $region9: #{_lambda_.4} parent=0 // pred_fallthru
    _
  // Predicated region
  $region10: #{_lambda_.4} parent=0 // pred_check
    _
  $region11: #{_lambda_.4} parent=0 // pred_check_branch
    %13 = sbr.rel (0) target = $region13
  $region12: #{_lambda_.4} parent=0 // pred_region
    _
  $region13: #{_lambda_.4} parent=0 // pred_fallthru
    _
  %v14 = vld [vmem:[%s1] sm:$0xff]
  %v15 = vld [vmem:[%s0] sm:$0xff]
  %v16 = vld [vmem:[%s0 + $0x8] sm:$0xff]
  %v17 = vld [vmem:[%s0 + $0x10] sm:$0xff]
  %v18 = vld [vmem:[%s0 + $0x18] sm:$0xff]
  %v19 = vld [vmem:[%s0 + $0x20] sm:$0xff]
  %v20 = vld [vmem:[%s0 + $0x28] sm:$0xff]
  %v21 = vld [vmem:[%s0 + $0x30] sm:$0xff]
  %v22 = vld [vmem:[%s0 + $0x38] sm:$0xff]
  %v23 = vld [vmem:[%s0 + $0x40] sm:$0xff]
  %vm24 = vcmask 588800
  %v26 = vsel %vm24, %v14, 0
  %28 = vmatprep.subr.mxu0 0.0
  %29 = vmatpush1.msra.mxu0 %v15
  %30 = vmatprep.subr.mxu0 0.0
  %31 = vmatpush1.msra.mxu0 %v16
  %32 = vmatprep.subr.mxu0 0.0
  %33 = vmatpush1.msra.mxu0 %v17
  %34 = vmatprep.subr.mxu0 0.0
  %35 = vmatpush1.msra.mxu0 %v18
  %36 = vmatprep.subr.mxu0 0.0
  %37 = vmatpush1.msra.mxu0 %v19
  %38 = vmatprep.subr.mxu0 0.0
  %39 = vmatpush1.msra.mxu0 %v20
  %40 = vmatprep.subr.mxu0 0.0
  %41 = vmatpush1.msra.mxu0 %v21
  %42 = vmatprep.subr.mxu0 0.0
  %43 = vmatpush1.msra.mxu0 %v22
  %44 = vmatprep.subr.mxu0 0.0
  %45 = vmatpush1.msra.mxu0 %v23
  %46 = vmatprep.subr.mxu0 0.0
  %47 = vmatpush1.msra.mxu0 0.0
  %48 = vmatprep.subr.mxu0 0.0
  %49 = vmatpush1.msra.mxu0 0.0
  %50 = vmatprep.subr.mxu0 0.0
  %51 = vmatpush1.msra.mxu0 0.0
  %52 = vmatprep.subr.mxu0 0.0
  %53 = vmatpush1.msra.mxu0 0.0
  %54 = vmatprep.subr.mxu0 0.0
  %55 = vmatpush1.msra.mxu0 0.0
  %56 = vmatprep.subr.mxu0 0.0
  %57 = vmatpush1.msra.mxu0 0.0
  %58 = vmatprep.subr.mxu0 0.0
  %59 = vmatpush1.msra.mxu0 0.0
  %60 = vmatprep.subr.mxu0 0.0
  %61 = vmatpush1.msra.mxu0 0.0
  %62 = vmatprep.subr.mxu0 0.0
  %63 = vmatpush1.msra.mxu0 0.0
  %64 = vmatprep.subr.mxu0 0.0
  %65 = vmatpush1.msra.mxu0 0.0
  %66 = vmatprep.subr.mxu0 0.0
  %67 = vmatpush1.msra.mxu0 0.0
  %68 = vmatprep.subr.mxu0 0.0
  %69 = vmatpush1.msra.mxu0 0.0
  %70 = vmatprep.subr.mxu0 0.0
  %71 = vmatpush1.msra.mxu0 0.0
  %72 = vmatprep.subr.mxu0 0.0
  %73 = vmatpush1.msra.mxu0 0.0
  %74 = vmatprep.subr.mxu0 0.0
  %75 = vmatpush1.msra.mxu0 0.0
  %76 = vmatprep.subr.mxu0 0.0
  %77 = vmatpush1.msra.mxu0 0.0
  %78 = vmatprep.subr.mxu0 0.0
  %79 = vmatpush1.msra.mxu0 0.0
  %80 = vmatprep.subr.mxu0 0.0
  %81 = vmatpush1.msra.mxu0 0.0
  %82 = vmatprep.subr.mxu0 0.0
  %83 = vmatpush1.msra.mxu0 0.0
  %84 = vmatprep.subr.mxu0 0.0
  %85 = vmatpush1.msra.mxu0 0.0
  %86 = vmatprep.subr.mxu0 0.0
  %87 = vmatpush1.msra.mxu0 0.0
  %88 = vmatprep.subr.mxu0 0.0
  %89 = vmatpush1.msra.mxu0 0.0
  %90 = vmatprep.subr.mxu0 0.0
  %91 = vmatpush1.msra.mxu0 0.0
  %92 = vmatprep.mubr.f32.mxu0 0.0
  %93 = vmatmul.mubr.f32.gmra.mrb[0].mxu0 %v26
  %v94 = vpop.f32.mrb[0].mxu0
  %v95 = vadd.f32 0.0, %v94
  %v96 = vpop.f32.mrb[0].mxu0
  %97 = vdwg.mxu0
  %s98 = scalar_lea.vmem %s0, 72
  %v99 = vld [vmem:[%s98] sm:$0xff]
  %v100 = vld [vmem:[%s98 + $0x8] sm:$0xff]
  %v101 = vld [vmem:[%s98 + $0x10] sm:$0xff]
  %v102 = vld [vmem:[%s98 + $0x18] sm:$0xff]
  %v103 = vld [vmem:[%s98 + $0x20] sm:$0xff]
  %v104 = vld [vmem:[%s98 + $0x28] sm:$0xff]
  %v105 = vld [vmem:[%s98 + $0x30] sm:$0xff]
  %v106 = vld [vmem:[%s98 + $0x38] sm:$0xff]
  %v107 = vld [vmem:[%s98 + $0x40] sm:$0xff]
  %108 = vmatprep.subr.mxu0 0.0
  %109 = vmatpush1.msra.mxu0 %v99
  %110 = vmatprep.subr.mxu0 0.0
  %111 = vmatpush1.msra.mxu0 %v100
  %112 = vmatprep.subr.mxu0 0.0
  %113 = vmatpush1.msra.mxu0 %v101
  %114 = vmatprep.subr.mxu0 0.0
  %115 = vmatpush1.msra.mxu0 %v102
  %116 = vmatprep.subr.mxu0 0.0
  %117 = vmatpush1.msra.mxu0 %v103
  %118 = vmatprep.subr.mxu0 0.0
  %119 = vmatpush1.msra.mxu0 %v104
  %120 = vmatprep.subr.mxu0 0.0
  %121 = vmatpush1.msra.mxu0 %v105
  %122 = vmatprep.subr.mxu0 0.0
  %123 = vmatpush1.msra.mxu0 %v106
  %124 = vmatprep.subr.mxu0 0.0
  %125 = vmatpush1.msra.mxu0 %v107
  %126 = vmatprep.subr.mxu0 0.0
  %127 = vmatpush1.msra.mxu0 0.0
  %128 = vmatprep.subr.mxu0 0.0
  %129 = vmatpush1.msra.mxu0 0.0
  %130 = vmatprep.subr.mxu0 0.0
  %131 = vmatpush1.msra.mxu0 0.0
  %132 = vmatprep.subr.mxu0 0.0
  %133 = vmatpush1.msra.mxu0 0.0
  %134 = vmatprep.subr.mxu0 0.0
  %135 = vmatpush1.msra.mxu0 0.0
  %136 = vmatprep.subr.mxu0 0.0
  %137 = vmatpush1.msra.mxu0 0.0
  %138 = vmatprep.subr.mxu0 0.0
  %139 = vmatpush1.msra.mxu0 0.0
  %140 = vmatprep.subr.mxu0 0.0
  %141 = vmatpush1.msra.mxu0 0.0
  %142 = vmatprep.subr.mxu0 0.0
  %143 = vmatpush1.msra.mxu0 0.0
  %144 = vmatprep.subr.mxu0 0.0
  %145 = vmatpush1.msra.mxu0 0.0
  %146 = vmatprep.subr.mxu0 0.0
  %147 = vmatpush1.msra.mxu0 0.0
  %148 = vmatprep.subr.mxu0 0.0
  %149 = vmatpush1.msra.mxu0 0.0
  %150 = vmatprep.subr.mxu0 0.0
  %151 = vmatpush1.msra.mxu0 0.0
  %152 = vmatprep.subr.mxu0 0.0
  %153 = vmatpush1.msra.mxu0 0.0
  %154 = vmatprep.subr.mxu0 0.0
  %155 = vmatpush1.msra.mxu0 0.0
  %156 = vmatprep.subr.mxu0 0.0
  %157 = vmatpush1.msra.mxu0 0.0
  %158 = vmatprep.subr.mxu0 0.0
  %159 = vmatpush1.msra.mxu0 0.0
  %160 = vmatprep.subr.mxu0 0.0
  %161 = vmatpush1.msra.mxu0 0.0
  %162 = vmatprep.subr.mxu0 0.0
  %163 = vmatpush1.msra.mxu0 0.0
  %164 = vmatprep.subr.mxu0 0.0
  %165 = vmatpush1.msra.mxu0 0.0
  %166 = vmatprep.subr.mxu0 0.0
  %167 = vmatpush1.msra.mxu0 0.0
  %168 = vmatprep.subr.mxu0 0.0
  %169 = vmatpush1.msra.mxu0 0.0
  %170 = vmatprep.subr.mxu0 0.0
  %171 = vmatpush1.msra.mxu0 0.0
  %172 = vmatprep.mubr.f32.mxu0 0.0
  %173 = vmatmul.mubr.f32.gmra.mrb[0].mxu0 %v26
  %v174 = vpop.f32.mrb[0].mxu0
  %v175 = vadd.f32 0.0, %v174
  %v176 = vpop.f32.mrb[0].mxu0
  %177 = vdwg.mxu0
  %v178 = vmax.f32 %v95, %v175
  %s179 = scalar_lea.vmem %s0, 144
  %v180 = vld [vmem:[%s179] sm:$0xff]
  %v181 = vld [vmem:[%s179 + $0x8] sm:$0xff]
  %v182 = vld [vmem:[%s179 + $0x10] sm:$0xff]
  %v183 = vld [vmem:[%s179 + $0x18] sm:$0xff]
  %v184 = vld [vmem:[%s179 + $0x20] sm:$0xff]
  %v185 = vld [vmem:[%s179 + $0x28] sm:$0xff]
  %v186 = vld [vmem:[%s179 + $0x30] sm:$0xff]
  %v187 = vld [vmem:[%s179 + $0x38] sm:$0xff]
  %v188 = vld [vmem:[%s179 + $0x40] sm:$0xff]
  %189 = vmatprep.subr.mxu0 0.0
  %190 = vmatpush1.msra.mxu0 %v180
  %191 = vmatprep.subr.mxu0 0.0
  %192 = vmatpush1.msra.mxu0 %v181
  %193 = vmatprep.subr.mxu0 0.0
  %194 = vmatpush1.msra.mxu0 %v182
  %195 = vmatprep.subr.mxu0 0.0
  %196 = vmatpush1.msra.mxu0 %v183
  %197 = vmatprep.subr.mxu0 0.0
  %198 = vmatpush1.msra.mxu0 %v184
  %199 = vmatprep.subr.mxu0 0.0
  %200 = vmatpush1.msra.mxu0 %v185
  %201 = vmatprep.subr.mxu0 0.0
  %202 = vmatpush1.msra.mxu0 %v186
  %203 = vmatprep.subr.mxu0 0.0
  %204 = vmatpush1.msra.mxu0 %v187
  %205 = vmatprep.subr.mxu0 0.0
  %206 = vmatpush1.msra.mxu0 %v188
  %207 = vmatprep.subr.mxu0 0.0
  %208 = vmatpush1.msra.mxu0 0.0
  %209 = vmatprep.subr.mxu0 0.0
  %210 = vmatpush1.msra.mxu0 0.0
  %211 = vmatprep.subr.mxu0 0.0
  %212 = vmatpush1.msra.mxu0 0.0
  %213 = vmatprep.subr.mxu0 0.0
  %214 = vmatpush1.msra.mxu0 0.0
  %215 = vmatprep.subr.mxu0 0.0
  %216 = vmatpush1.msra.mxu0 0.0
  %217 = vmatprep.subr.mxu0 0.0
  %218 = vmatpush1.msra.mxu0 0.0
  %219 = vmatprep.subr.mxu0 0.0
  %220 = vmatpush1.msra.mxu0 0.0
  %221 = vmatprep.subr.mxu0 0.0
  %222 = vmatpush1.msra.mxu0 0.0
  %223 = vmatprep.subr.mxu0 0.0
  %224 = vmatpush1.msra.mxu0 0.0
  %225 = vmatprep.subr.mxu0 0.0
  %226 = vmatpush1.msra.mxu0 0.0
  %227 = vmatprep.subr.mxu0 0.0
  %228 = vmatpush1.msra.mxu0 0.0
  %229 = vmatprep.subr.mxu0 0.0
  %230 = vmatpush1.msra.mxu0 0.0
  %231 = vmatprep.subr.mxu0 0.0
  %232 = vmatpush1.msra.mxu0 0.0
  %233 = vmatprep.subr.mxu0 0.0
  %234 = vmatpush1.msra.mxu0 0.0
  %235 = vmatprep.subr.mxu0 0.0
  %236 = vmatpush1.msra.mxu0 0.0
  %237 = vmatprep.subr.mxu0 0.0
  %238 = vmatpush1.msra.mxu0 0.0
  %239 = vmatprep.subr.mxu0 0.0
  %240 = vmatpush1.msra.mxu0 0.0
  %241 = vmatprep.subr.mxu0 0.0
  %242 = vmatpush1.msra.mxu0 0.0
  %243 = vmatprep.subr.mxu0 0.0
  %244 = vmatpush1.msra.mxu0 0.0
  %245 = vmatprep.subr.mxu0 0.0
  %246 = vmatpush1.msra.mxu0 0.0
  %247 = vmatprep.subr.mxu0 0.0
  %248 = vmatpush1.msra.mxu0 0.0
  %249 = vmatprep.subr.mxu0 0.0
  %250 = vmatpush1.msra.mxu0 0.0
  %251 = vmatprep.subr.mxu0 0.0
  %252 = vmatpush1.msra.mxu0 0.0
  %253 = vmatprep.mubr.f32.mxu0 0.0
  %254 = vmatmul.mubr.f32.gmra.mrb[0].mxu0 %v26
  %v255 = vpop.f32.mrb[0].mxu0
  %v256 = vadd.f32 0.0, %v255
  %v257 = vpop.f32.mrb[0].mxu0
  %258 = vdwg.mxu0
  %v259 = vmax.f32 %v178, %v256
  %s260 = scalar_lea.vmem %s0, 216
  %v261 = vld [vmem:[%s260] sm:$0xff]
  %v262 = vld [vmem:[%s260 + $0x8] sm:$0xff]
  %v263 = vld [vmem:[%s260 + $0x10] sm:$0xff]
  %v264 = vld [vmem:[%s260 + $0x18] sm:$0xff]
  %v265 = vld [vmem:[%s260 + $0x20] sm:$0xff]
  %v266 = vld [vmem:[%s260 + $0x28] sm:$0xff]
  %v267 = vld [vmem:[%s260 + $0x30] sm:$0xff]
  %v268 = vld [vmem:[%s260 + $0x38] sm:$0xff]
  %v269 = vld [vmem:[%s260 + $0x40] sm:$0xff]
  %270 = vmatprep.subr.mxu0 0.0
  %271 = vmatpush1.msra.mxu0 %v261
  %272 = vmatprep.subr.mxu0 0.0
  %273 = vmatpush1.msra.mxu0 %v262
  %274 = vmatprep.subr.mxu0 0.0
  %275 = vmatpush1.msra.mxu0 %v263
  %276 = vmatprep.subr.mxu0 0.0
  %277 = vmatpush1.msra.mxu0 %v264
  %278 = vmatprep.subr.mxu0 0.0
  %279 = vmatpush1.msra.mxu0 %v265
  %280 = vmatprep.subr.mxu0 0.0
  %281 = vmatpush1.msra.mxu0 %v266
  %282 = vmatprep.subr.mxu0 0.0
  %283 = vmatpush1.msra.mxu0 %v267
  %284 = vmatprep.subr.mxu0 0.0
  %285 = vmatpush1.msra.mxu0 %v268
  %286 = vmatprep.subr.mxu0 0.0
  %287 = vmatpush1.msra.mxu0 %v269
  %288 = vmatprep.subr.mxu0 0.0
  %289 = vmatpush1.msra.mxu0 0.0
  %290 = vmatprep.subr.mxu0 0.0
  %291 = vmatpush1.msra.mxu0 0.0
  %292 = vmatprep.subr.mxu0 0.0
  %293 = vmatpush1.msra.mxu0 0.0
  %294 = vmatprep.subr.mxu0 0.0
  %295 = vmatpush1.msra.mxu0 0.0
  %296 = vmatprep.subr.mxu0 0.0
  %297 = vmatpush1.msra.mxu0 0.0
  %298 = vmatprep.subr.mxu0 0.0
  %299 = vmatpush1.msra.mxu0 0.0
  %300 = vmatprep.subr.mxu0 0.0
  %301 = vmatpush1.msra.mxu0 0.0
  %302 = vmatprep.subr.mxu0 0.0
  %303 = vmatpush1.msra.mxu0 0.0
  %304 = vmatprep.subr.mxu0 0.0
  %305 = vmatpush1.msra.mxu0 0.0
  %306 = vmatprep.subr.mxu0 0.0
  %307 = vmatpush1.msra.mxu0 0.0
  %308 = vmatprep.subr.mxu0 0.0
  %309 = vmatpush1.msra.mxu0 0.0
  %310 = vmatprep.subr.mxu0 0.0
  %311 = vmatpush1.msra.mxu0 0.0
  %312 = vmatprep.subr.mxu0 0.0
  %313 = vmatpush1.msra.mxu0 0.0
  %314 = vmatprep.subr.mxu0 0.0
  %315 = vmatpush1.msra.mxu0 0.0
  %316 = vmatprep.subr.mxu0 0.0
  %317 = vmatpush1.msra.mxu0 0.0
  %318 = vmatprep.subr.mxu0 0.0
  %319 = vmatpush1.msra.mxu0 0.0
  %320 = vmatprep.subr.mxu0 0.0
  %321 = vmatpush1.msra.mxu0 0.0
  %322 = vmatprep.subr.mxu0 0.0
  %323 = vmatpush1.msra.mxu0 0.0
  %324 = vmatprep.subr.mxu0 0.0
  %325 = vmatpush1.msra.mxu0 0.0
  %326 = vmatprep.subr.mxu0 0.0
  %327 = vmatpush1.msra.mxu0 0.0
  %328 = vmatprep.subr.mxu0 0.0
  %329 = vmatpush1.msra.mxu0 0.0
  %330 = vmatprep.subr.mxu0 0.0
  %331 = vmatpush1.msra.mxu0 0.0
  %332 = vmatprep.subr.mxu0 0.0
  %333 = vmatpush1.msra.mxu0 0.0
  %334 = vmatprep.mubr.f32.mxu0 0.0
  %335 = vmatmul.mubr.f32.gmra.mrb[0].mxu0 %v26
  %v336 = vpop.f32.mrb[0].mxu0
  %v337 = vadd.f32 0.0, %v336
  %v338 = vpop.f32.mrb[0].mxu0
  %339 = vdwg.mxu0
  %v340 = vmax.f32 %v259, %v337
  %v341 = vld [vmem:[%s2] sm:$0xff]
  %343 = vset.pattern.permute.xlu0 0
  %344 = vperm.xlu0 %343, %v341
  %v345 = vpop.permute.xlu0 %344
  %v347 = vadd.f32 %v340, %v345
  %v348 = vmax.f32 %v347, 0.0
  %vm349 = vcmask 801792
  %350 = vst.msk [vmem:[%s3] sm:$0xff] %vm349, %v348
  // Predicated region
  $region14: #{_lambda_.4} parent=0 // pred_check
    _
  $region15: #{_lambda_.4} parent=0 // pred_check_branch
    %352 = sbr.rel (0) target = $region17
  $region16: #{_lambda_.4} parent=0 // pred_region
    _
  $region17: #{_lambda_.4} parent=0 // pred_fallthru
    _
  // Predicated region
  $region18: #{_lambda_.4} parent=0 // pred_check
    _
  $region19: #{_lambda_.4} parent=0 // pred_check_branch
    %354 = sbr.rel (0) target = $region21
  $region20: #{_lambda_.4} parent=0 // pred_region
    _
  $region21: #{_lambda_.4} parent=0 // pred_fallthru
    _

// kernel: _lambda_.5
$region0: #{_lambda_.5}
  #allocation0 [shape = 'u32[]', space=smem, size = 0x4, offset = 0x4, fixed_abs, tag = 'smem constant byte address 0x4 - core index']
  #allocation1 [shape = 'u32[144,128]{1,0:T(1,128)}', space=vmem, size = 0x12000, scoped, tag = 'internal scratch']
  %s0 = inlined_call_operand.vmem [shape: f32[2,392], index: 0, kind: input, shape index: {}]
  %s1 = inlined_call_operand.vmem [shape: f32[392,392], index: 1, kind: input, shape index: {}]
  %s2 = inlined_call_operand.vmem [shape: f32[1,392], index: 2, kind: input, shape index: {}]
  %s3 = inlined_call_operand.vmem [shape: f32[392,10], index: 3, kind: input, shape index: {}]
  %s4 = inlined_call_operand.vmem [shape: f32[1,10], index: 4, kind: input, shape index: {}]
  %s5 = inlined_call_operand.hbm [shape: f32[2,10], index: 5, kind: output, shape index: {}]
  %s6 = sld [smem:[#allocation0]]
  $region30: #{_lambda_.5} parent=0
    _
  %s8 = ssub.s32 1, %s6
  %s9 = scalar_select 0, %s8, %s6
  $region1: #{_lambda_.5} parent=0
    #allocation2 [shape = 'u8[1024]{0}', space=vmem, size = 0x400, scoped, tag = 'output window, operand 0, single buffered']
    #allocation3 [shape = 's32[1]{0}', space=sflag, size = 0x4, scoped, tag = 'scoped memory for _lambda_.5']
    %10 = vsyncpa [#allocation3], 0
    // Predicated region
    $region2: #{_lambda_.5} parent=1 // pred_check
      _
    $region3: #{_lambda_.5} parent=1 // pred_check_branch
      %12 = sbr.rel (0) target = $region5
    $region4: #{_lambda_.5} parent=1 // pred_region
      _
    $region5: #{_lambda_.5} parent=1 // pred_fallthru
      _
    // Predicated region
    $region6: #{_lambda_.5} parent=1 // pred_check
      _
    $region7: #{_lambda_.5} parent=1 // pred_check_branch
      %14 = sbr.rel (0) target = $region9
    $region8: #{_lambda_.5} parent=1 // pred_region
      _
    $region9: #{_lambda_.5} parent=1 // pred_fallthru
      _
    // Predicated region
    $region10: #{_lambda_.5} parent=1 // pred_check
      _
    $region11: #{_lambda_.5} parent=1 // pred_check_branch
      %16 = sbr.rel (0) target = $region13
    $region12: #{_lambda_.5} parent=1 // pred_region
      _
    $region13: #{_lambda_.5} parent=1 // pred_fallthru
      _
    // Predicated region
    $region14: #{_lambda_.5} parent=1 // pred_check
      _
    $region15: #{_lambda_.5} parent=1 // pred_check_branch
      %18 = sbr.rel (0) target = $region17
    $region16: #{_lambda_.5} parent=1 // pred_region
      _
    $region17: #{_lambda_.5} parent=1 // pred_fallthru
      _
    // Predicated region
    $region18: #{_lambda_.5} parent=1 // pred_check
      _
    $region19: #{_lambda_.5} parent=1 // pred_check_branch
      %20 = sbr.rel (0) target = $region21
    $region20: #{_lambda_.5} parent=1 // pred_region
      _
    $region21: #{_lambda_.5} parent=1 // pred_fallthru
      _
    %v21 = vld [vmem:[%s0] sm:$0xff]
    %v22 = vld [vmem:[%s1] sm:$0xff]
    %v23 = vld [vmem:[%s1 + $0x8] sm:$0xff]
    %v24 = vld [vmem:[%s1 + $0x10] sm:$0xff]
    %v25 = vld [vmem:[%s1 + $0x18] sm:$0xff]
    %v26 = vld [vmem:[%s1 + $0x20] sm:$0xff]
    %v27 = vld [vmem:[%s1 + $0x28] sm:$0xff]
    %v28 = vld [vmem:[%s1 + $0x30] sm:$0xff]
    %v29 = vld [vmem:[%s1 + $0x38] sm:$0xff]
    %v30 = vld [vmem:[%s1 + $0x40] sm:$0xff]
    %v31 = vld [vmem:[%s1 + $0x48] sm:$0xff]
    %v32 = vld [vmem:[%s1 + $0x50] sm:$0xff]
    %v33 = vld [vmem:[%s1 + $0x58] sm:$0xff]
    %v34 = vld [vmem:[%s1 + $0x60] sm:$0xff]
    %v35 = vld [vmem:[%s1 + $0x68] sm:$0xff]
    %v36 = vld [vmem:[%s1 + $0x70] sm:$0xff]
    %v37 = vld [vmem:[%s1 + $0x78] sm:$0xff]
    %v38 = vld [vmem:[%s1 + $0x80] sm:$0xff]
    %v39 = vld [vmem:[%s1 + $0x88] sm:$0xff]
    %v40 = vld [vmem:[%s1 + $0x90] sm:$0xff]
    %v41 = vld [vmem:[%s1 + $0x98] sm:$0xff]
    %v42 = vld [vmem:[%s1 + $0xa0] sm:$0xff]
    %v43 = vld [vmem:[%s1 + $0xa8] sm:$0xff]
    %v44 = vld [vmem:[%s1 + $0xb0] sm:$0xff]
    %v45 = vld [vmem:[%s1 + $0xb8] sm:$0xff]
    %v46 = vld [vmem:[%s1 + $0xc0] sm:$0xff]
    %v47 = vld [vmem:[%s1 + $0xc8] sm:$0xff]
    %v48 = vld [vmem:[%s1 + $0xd0] sm:$0xff]
    %v49 = vld [vmem:[%s1 + $0xd8] sm:$0xff]
    %v50 = vld [vmem:[%s1 + $0xe0] sm:$0xff]
    %v51 = vld [vmem:[%s1 + $0xe8] sm:$0xff]
    %v52 = vld [vmem:[%s1 + $0xf0] sm:$0xff]
    %v53 = vld [vmem:[%s1 + $0xf8] sm:$0xff]
    %v54 = vld [vmem:[%s1 + $0x100] sm:$0xff]
    %v55 = vld [vmem:[%s1 + $0x108] sm:$0xff]
    %v56 = vld [vmem:[%s1 + $0x110] sm:$0xff]
    %v57 = vld [vmem:[%s1 + $0x118] sm:$0xff]
    %v58 = vld [vmem:[%s1 + $0x120] sm:$0xff]
    %v59 = vld [vmem:[%s1 + $0x128] sm:$0xff]
    %v60 = vld [vmem:[%s1 + $0x130] sm:$0xff]
    %v61 = vld [vmem:[%s1 + $0x138] sm:$0xff]
    %v62 = vld [vmem:[%s1 + $0x140] sm:$0xff]
    %v63 = vld [vmem:[%s1 + $0x148] sm:$0xff]
    %v64 = vld [vmem:[%s1 + $0x150] sm:$0xff]
    %v65 = vld [vmem:[%s1 + $0x158] sm:$0xff]
    %v66 = vld [vmem:[%s1 + $0x160] sm:$0xff]
    %v67 = vld [vmem:[%s1 + $0x168] sm:$0xff]
    %v68 = vld [vmem:[%s1 + $0x170] sm:$0xff]
    %v69 = vld [vmem:[%s1 + $0x178] sm:$0xff]
    %v70 = vld [vmem:[%s1 + $0x180] sm:$0xff]
    %v71 = vld [vmem:[%s1 + $0x188] sm:$0xff]
    %v72 = vld [vmem:[%s1 + $0x190] sm:$0xff]
    %v73 = vld [vmem:[%s1 + $0x198] sm:$0xff]
    %v74 = vld [vmem:[%s1 + $0x1a0] sm:$0xff]
    %v75 = vld [vmem:[%s1 + $0x1a8] sm:$0xff]
    %v76 = vld [vmem:[%s1 + $0x1b0] sm:$0xff]
    %v77 = vld [vmem:[%s1 + $0x1b8] sm:$0xff]
    %v78 = vld [vmem:[%s1 + $0x1c0] sm:$0xff]
    %v79 = vld [vmem:[%s1 + $0x1c8] sm:$0xff]
    %v80 = vld [vmem:[%s1 + $0x1d0] sm:$0xff]
    %v81 = vld [vmem:[%s1 + $0x1d8] sm:$0xff]
    %v82 = vld [vmem:[%s1 + $0x1e0] sm:$0xff]
    %v83 = vld [vmem:[%s1 + $0x1e8] sm:$0xff]
    %v84 = vld [vmem:[%s1 + $0x1f0] sm:$0xff]
    %v85 = vld [vmem:[%s1 + $0x1f8] sm:$0xff]
    %v86 = vld [vmem:[%s1 + $0x200] sm:$0xff]
    %v87 = vld [vmem:[%s1 + $0x208] sm:$0xff]
    %v88 = vld [vmem:[%s1 + $0x210] sm:$0xff]
    %v89 = vld [vmem:[%s1 + $0x218] sm:$0xff]
    %v90 = vld [vmem:[%s1 + $0x220] sm:$0xff]
    %v91 = vld [vmem:[%s1 + $0x228] sm:$0xff]
    %v92 = vld [vmem:[%s1 + $0x230] sm:$0xff]
    %v93 = vld [vmem:[%s1 + $0x238] sm:$0xff]
    %v94 = vld [vmem:[%s1 + $0x240] sm:$0xff]
    %v95 = vld [vmem:[%s1 + $0x248] sm:$0xff]
    %v96 = vld [vmem:[%s1 + $0x250] sm:$0xff]
    %v97 = vld [vmem:[%s1 + $0x258] sm:$0xff]
    %v98 = vld [vmem:[%s1 + $0x260] sm:$0xff]
    %v99 = vld [vmem:[%s1 + $0x268] sm:$0xff]
    %v100 = vld [vmem:[%s1 + $0x270] sm:$0xff]
    %v101 = vld [vmem:[%s1 + $0x278] sm:$0xff]
    %v102 = vld [vmem:[%s1 + $0x280] sm:$0xff]
    %v103 = vld [vmem:[%s1 + $0x288] sm:$0xff]
    %v104 = vld [vmem:[%s1 + $0x290] sm:$0xff]
    %v105 = vld [vmem:[%s1 + $0x298] sm:$0xff]
    %v106 = vld [vmem:[%s1 + $0x2a0] sm:$0xff]
    %v107 = vld [vmem:[%s1 + $0x2a8] sm:$0xff]
    %v108 = vld [vmem:[%s1 + $0x2b0] sm:$0xff]
    %v109 = vld [vmem:[%s1 + $0x2b8] sm:$0xff]
    %v110 = vld [vmem:[%s1 + $0x2c0] sm:$0xff]
    %v111 = vld [vmem:[%s1 + $0x2c8] sm:$0xff]
    %v112 = vld [vmem:[%s1 + $0x2d0] sm:$0xff]
    %v113 = vld [vmem:[%s1 + $0x2d8] sm:$0xff]
    %v114 = vld [vmem:[%s1 + $0x2e0] sm:$0xff]
    %v115 = vld [vmem:[%s1 + $0x2e8] sm:$0xff]
    %v116 = vld [vmem:[%s1 + $0x2f0] sm:$0xff]
    %v117 = vld [vmem:[%s1 + $0x2f8] sm:$0xff]
    %v118 = vld [vmem:[%s1 + $0x300] sm:$0xff]
    %v119 = vld [vmem:[%s1 + $0x308] sm:$0xff]
    %v120 = vld [vmem:[%s1 + $0x310] sm:$0xff]
    %v121 = vld [vmem:[%s1 + $0x318] sm:$0xff]
    %v122 = vld [vmem:[%s1 + $0x320] sm:$0xff]
    %v123 = vld [vmem:[%s1 + $0x328] sm:$0xff]
    %v124 = vld [vmem:[%s1 + $0x330] sm:$0xff]
    %v125 = vld [vmem:[%s1 + $0x338] sm:$0xff]
    %v126 = vld [vmem:[%s1 + $0x340] sm:$0xff]
    %v127 = vld [vmem:[%s1 + $0x348] sm:$0xff]
    %v128 = vld [vmem:[%s1 + $0x350] sm:$0xff]
    %v129 = vld [vmem:[%s1 + $0x358] sm:$0xff]
    %v130 = vld [vmem:[%s1 + $0x360] sm:$0xff]
    %v131 = vld [vmem:[%s1 + $0x368] sm:$0xff]
    %v132 = vld [vmem:[%s1 + $0x370] sm:$0xff]
    %v133 = vld [vmem:[%s1 + $0x378] sm:$0xff]
    %v134 = vld [vmem:[%s1 + $0x380] sm:$0xff]
    %v135 = vld [vmem:[%s1 + $0x388] sm:$0xff]
    %v136 = vld [vmem:[%s1 + $0x390] sm:$0xff]
    %v137 = vld [vmem:[%s1 + $0x398] sm:$0xff]
    %v138 = vld [vmem:[%s1 + $0x3a0] sm:$0xff]
    %v139 = vld [vmem:[%s1 + $0x3a8] sm:$0xff]
    %v140 = vld [vmem:[%s1 + $0x3b0] sm:$0xff]
    %v141 = vld [vmem:[%s1 + $0x3b8] sm:$0xff]
    %v142 = vld [vmem:[%s1 + $0x3c0] sm:$0xff]
    %v143 = vld [vmem:[%s1 + $0x3c8] sm:$0xff]
    %v144 = vld [vmem:[%s1 + $0x3d0] sm:$0xff]
    %v145 = vld [vmem:[%s1 + $0x3d8] sm:$0xff]
    %v146 = vld [vmem:[%s1 + $0x3e0] sm:$0xff]
    %v147 = vld [vmem:[%s1 + $0x3e8] sm:$0xff]
    %v148 = vld [vmem:[%s1 + $0x3f0] sm:$0xff]
    %v149 = vld [vmem:[%s1 + $0x3f8] sm:$0xff]
    %v150 = vld [vmem:[%s1 + $0x400] sm:$0xff]
    %v151 = vld [vmem:[%s1 + $0x408] sm:$0xff]
    %v152 = vld [vmem:[%s1 + $0x410] sm:$0xff]
    %v153 = vld [vmem:[%s1 + $0x418] sm:$0xff]
    %v154 = vld [vmem:[%s1 + $0x420] sm:$0xff]
    %v155 = vld [vmem:[%s1 + $0x428] sm:$0xff]
    %v156 = vld [vmem:[%s1 + $0x430] sm:$0xff]
    %v157 = vld [vmem:[%s1 + $0x438] sm:$0xff]
    %v158 = vld [vmem:[%s1 + $0x440] sm:$0xff]
    %v159 = vld [vmem:[%s1 + $0x448] sm:$0xff]
    %v160 = vld [vmem:[%s1 + $0x450] sm:$0xff]
    %v161 = vld [vmem:[%s1 + $0x458] sm:$0xff]
    %v162 = vld [vmem:[%s1 + $0x460] sm:$0xff]
    %v163 = vld [vmem:[%s1 + $0x468] sm:$0xff]
    %v164 = vld [vmem:[%s1 + $0x470] sm:$0xff]
    %v165 = vld [vmem:[%s1 + $0x478] sm:$0xff]
    %v166 = vld [vmem:[%s1 + $0x480] sm:$0xff]
    %v167 = vld [vmem:[%s1 + $0x488] sm:$0xff]
    %v168 = vld [vmem:[%s1 + $0x490] sm:$0xff]
    %v169 = vld [vmem:[%s1 + $0x498] sm:$0xff]
    %v170 = vld [vmem:[%s1 + $0x4a0] sm:$0xff]
    %v171 = vld [vmem:[%s1 + $0x4a8] sm:$0xff]
    %v172 = vld [vmem:[%s1 + $0x4b0] sm:$0xff]
    %v173 = vld [vmem:[%s1 + $0x4b8] sm:$0xff]
    %v174 = vld [vmem:[%s1 + $0x4c0] sm:$0xff]
    %v175 = vld [vmem:[%s1 + $0x4c8] sm:$0xff]
    %v176 = vld [vmem:[%s1 + $0x4d0] sm:$0xff]
    %v177 = vld [vmem:[%s1 + $0x4d8] sm:$0xff]
    %v178 = vld [vmem:[%s1 + $0x4e0] sm:$0xff]
    %v179 = vld [vmem:[%s1 + $0x4e8] sm:$0xff]
    %v180 = vld [vmem:[%s1 + $0x4f0] sm:$0xff]
    %v181 = vld [vmem:[%s1 + $0x4f8] sm:$0xff]
    %v182 = vld [vmem:[%s1 + $0x500] sm:$0xff]
    %v183 = vld [vmem:[%s1 + $0x508] sm:$0xff]
    %v184 = vld [vmem:[%s1 + $0x510] sm:$0xff]
    %v185 = vld [vmem:[%s1 + $0x518] sm:$0xff]
    %v186 = vld [vmem:[%s1 + $0x520] sm:$0xff]
    %v187 = vld [vmem:[%s1 + $0x528] sm:$0xff]
    %v188 = vld [vmem:[%s1 + $0x530] sm:$0xff]
    %v189 = vld [vmem:[%s1 + $0x538] sm:$0xff]
    %v190 = vld [vmem:[%s1 + $0x540] sm:$0xff]
    %v191 = vld [vmem:[%s1 + $0x548] sm:$0xff]
    %v192 = vld [vmem:[%s1 + $0x550] sm:$0xff]
    %v193 = vld [vmem:[%s1 + $0x558] sm:$0xff]
    %v194 = vld [vmem:[%s1 + $0x560] sm:$0xff]
    %v195 = vld [vmem:[%s1 + $0x568] sm:$0xff]
    %v196 = vld [vmem:[%s1 + $0x570] sm:$0xff]
    %v197 = vld [vmem:[%s1 + $0x578] sm:$0xff]
    %v198 = vld [vmem:[%s1 + $0x580] sm:$0xff]
    %v199 = vld [vmem:[%s1 + $0x588] sm:$0xff]
    %v200 = vld [vmem:[%s1 + $0x590] sm:$0xff]
    %v201 = vld [vmem:[%s1 + $0x598] sm:$0xff]
    %v202 = vld [vmem:[%s1 + $0x5a0] sm:$0xff]
    %v203 = vld [vmem:[%s1 + $0x5a8] sm:$0xff]
    %v204 = vld [vmem:[%s1 + $0x5b0] sm:$0xff]
    %v205 = vld [vmem:[%s1 + $0x5b8] sm:$0xff]
    %v206 = vld [vmem:[%s1 + $0x5c0] sm:$0xff]
    %v207 = vld [vmem:[%s1 + $0x5c8] sm:$0xff]
    %v208 = vld [vmem:[%s1 + $0x5d0] sm:$0xff]
    %v209 = vld [vmem:[%s1 + $0x5d8] sm:$0xff]
    %v210 = vld [vmem:[%s1 + $0x5e0] sm:$0xff]
    %v211 = vld [vmem:[%s1 + $0x5e8] sm:$0xff]
    %v212 = vld [vmem:[%s1 + $0x5f0] sm:$0xff]
    %v213 = vld [vmem:[%s1 + $0x5f8] sm:$0xff]
    %v214 = vld [vmem:[%s1 + $0x600] sm:$0xff]
    %v215 = vld [vmem:[%s1 + $0x608] sm:$0xff]
    %v216 = vld [vmem:[%s1 + $0x610] sm:$0xff]
    %v217 = vld [vmem:[%s1 + $0x618] sm:$0xff]
    %v218 = vld [vmem:[%s2] sm:$0xf]
    %v220 = vlaneseq
    %v221 = vshrl.u32 %v220, 7
    %v222 = vsub.s32 0, %v221
    %v223 = vrot.slane %v218, %v222
    %v224 = vlaneseq
    %v225 = vshrl.u32 %v224, 7
    %v226 = vsub.s32 1, %v225
    %v227 = vrot.slane %v218, %v226
    %v228 = vlaneseq
    %v229 = vshrl.u32 %v228, 7
    %v230 = vsub.s32 2, %v229
    %v231 = vrot.slane %v218, %v230
    %v232 = vlaneseq
    %v233 = vshrl.u32 %v232, 7
    %v234 = vsub.s32 3, %v233
    %v235 = vrot.slane %v218, %v234
    %v241 = vcombine.high %v21, %v21
    %v243 = vunpack.c.l.s4 1983009808
    %v244 = vunpack.c.0.s8 %v243
    %v245 = vlaneseq
    %v246 = vshrl.u32 %v245, 7
    %v247 = vsub.s32 %v244, %v246
    %v248 = vrot.slane %v21, %v247
    %v250 = vunpack.c.l.s4 1983009808
    %v251 = vunpack.c.0.s8 %v250
    %v252 = vlaneseq
    %v253 = vshrl.u32 %v252, 7
    %v254 = vsub.s32 %v251, %v253
    %v255 = vrot.slane %v241, %v254
    %v256 = vcombine.high %v248, %v248
    %v257 = vcombine.high %v255, %v255
    %vm261 = vcmask 64512
    %v262 = vsel %vm261, %v257, 0
    %264 = vmatprep.subr.mxu0 %v23
    %265 = vmatpush1.msra.mxu0 %v22
    %266 = vmatprep.subr.mxu0 %v27
    %267 = vmatpush1.msra.mxu0 %v26
    %268 = vmatprep.subr.mxu0 %v31
    %269 = vmatpush1.msra.mxu0 %v30
    %270 = vmatprep.subr.mxu0 %v35
    %271 = vmatpush1.msra.mxu0 %v34
    %272 = vmatprep.subr.mxu0 %v39
    %273 = vmatpush1.msra.mxu0 %v38
    %274 = vmatprep.subr.mxu0 %v43
    %275 = vmatpush1.msra.mxu0 %v42
    %276 = vmatprep.subr.mxu0 %v47
    %277 = vmatpush1.msra.mxu0 %v46
    %278 = vmatprep.subr.mxu0 %v51
    %279 = vmatpush1.msra.mxu0 %v50
    %280 = vmatprep.subr.mxu0 %v55
    %281 = vmatpush1.msra.mxu0 %v54
    %282 = vmatprep.subr.mxu0 %v59
    %283 = vmatpush1.msra.mxu0 %v58
    %284 = vmatprep.subr.mxu0 %v63
    %285 = vmatpush1.msra.mxu0 %v62
    %286 = vmatprep.subr.mxu0 %v67
    %287 = vmatpush1.msra.mxu0 %v66
    %288 = vmatprep.subr.mxu0 %v71
    %289 = vmatpush1.msra.mxu0 %v70
    %290 = vmatprep.subr.mxu0 %v75
    %291 = vmatpush1.msra.mxu0 %v74
    %292 = vmatprep.subr.mxu0 %v79
    %293 = vmatpush1.msra.mxu0 %v78
    %294 = vmatprep.subr.mxu0 %v83
    %295 = vmatpush1.msra.mxu0 %v82
    %296 = vmatprep.subr.mxu0 %v87
    %297 = vmatpush1.msra.mxu0 %v86
    %298 = vmatprep.subr.mxu0 %v91
    %299 = vmatpush1.msra.mxu0 %v90
    %300 = vmatprep.subr.mxu0 %v95
    %301 = vmatpush1.msra.mxu0 %v94
    %302 = vmatprep.subr.mxu0 %v99
    %303 = vmatpush1.msra.mxu0 %v98
    %304 = vmatprep.subr.mxu0 %v103
    %305 = vmatpush1.msra.mxu0 %v102
    %306 = vmatprep.subr.mxu0 %v107
    %307 = vmatpush1.msra.mxu0 %v106
    %308 = vmatprep.subr.mxu0 %v111
    %309 = vmatpush1.msra.mxu0 %v110
    %310 = vmatprep.subr.mxu0 %v115
    %311 = vmatpush1.msra.mxu0 %v114
    %312 = vmatprep.subr.mxu0 %v119
    %313 = vmatpush1.msra.mxu0 %v118
    %314 = vmatprep.subr.mxu0 %v123
    %315 = vmatpush1.msra.mxu0 %v122
    %316 = vmatprep.subr.mxu0 %v127
    %317 = vmatpush1.msra.mxu0 %v126
    %318 = vmatprep.subr.mxu0 %v131
    %319 = vmatpush1.msra.mxu0 %v130
    %320 = vmatprep.subr.mxu0 %v135
    %321 = vmatpush1.msra.mxu0 %v134
    %322 = vmatprep.subr.mxu0 %v139
    %323 = vmatpush1.msra.mxu0 %v138
    %324 = vmatprep.subr.mxu0 %v143
    %325 = vmatpush1.msra.mxu0 %v142
    %326 = vmatprep.subr.mxu0 %v147
    %327 = vmatpush1.msra.mxu0 %v146
    %328 = vmatprep.mubr.f32.mxu0 %v256
    %329 = vmatmul.mubr.f32.gmra.mrb[0].mxu0 %v248
    %v330 = vpop.f32.mrb[0].mxu0
    %v331 = vadd.f32 %v223, %v330
    %v332 = vpop.f32.mrb[0].mxu0
    %v333 = vadd.f32 %v227, %v332
    %334 = vdwg.mxu0
    %335 = vmatprep.subr.mxu0 %v151
    %336 = vmatpush1.msra.mxu0 %v150
    %337 = vmatprep.subr.mxu0 %v155
    %338 = vmatpush1.msra.mxu0 %v154
    %339 = vmatprep.subr.mxu0 %v159
    %340 = vmatpush1.msra.mxu0 %v158
    %341 = vmatprep.subr.mxu0 %v163
    %342 = vmatpush1.msra.mxu0 %v162
    %343 = vmatprep.subr.mxu0 %v167
    %344 = vmatpush1.msra.mxu0 %v166
    %345 = vmatprep.subr.mxu0 %v171
    %346 = vmatpush1.msra.mxu0 %v170
    %347 = vmatprep.subr.mxu0 %v175
    %348 = vmatpush1.msra.mxu0 %v174
    %349 = vmatprep.subr.mxu0 %v179
    %350 = vmatpush1.msra.mxu0 %v178
    %351 = vmatprep.subr.mxu0 %v183
    %352 = vmatpush1.msra.mxu0 %v182
    %353 = vmatprep.subr.mxu0 %v187
    %354 = vmatpush1.msra.mxu0 %v186
    %355 = vmatprep.subr.mxu0 %v191
    %356 = vmatpush1.msra.mxu0 %v190
    %357 = vmatprep.subr.mxu0 %v195
    %358 = vmatpush1.msra.mxu0 %v194
    %359 = vmatprep.subr.mxu0 %v199
    %360 = vmatpush1.msra.mxu0 %v198
    %361 = vmatprep.subr.mxu0 %v203
    %362 = vmatpush1.msra.mxu0 %v202
    %363 = vmatprep.subr.mxu0 %v207
    %364 = vmatpush1.msra.mxu0 %v206
    %365 = vmatprep.subr.mxu0 %v211
    %366 = vmatpush1.msra.mxu0 %v210
    %367 = vmatprep.subr.mxu0 %v215
    %368 = vmatpush1.msra.mxu0 %v214
    %369 = vmatprep.subr.mxu0 0.0
    %370 = vmatpush1.msra.mxu0 0.0
    %371 = vmatprep.subr.mxu0 0.0
    %372 = vmatpush1.msra.mxu0 0.0
    %373 = vmatprep.subr.mxu0 0.0
    %374 = vmatpush1.msra.mxu0 0.0
    %375 = vmatprep.subr.mxu0 0.0
    %376 = vmatpush1.msra.mxu0 0.0
    %377 = vmatprep.subr.mxu0 0.0
    %378 = vmatpush1.msra.mxu0 0.0
    %379 = vmatprep.subr.mxu0 0.0
    %380 = vmatpush1.msra.mxu0 0.0
    %381 = vmatprep.subr.mxu0 0.0
    %382 = vmatpush1.msra.mxu0 0.0
    %383 = vmatprep.subr.mxu0 0.0
    %384 = vmatpush1.msra.mxu0 0.0
    %385 = vmatprep.subr.mxu0 0.0
    %386 = vmatpush1.msra.mxu0 0.0
    %387 = vmatprep.subr.mxu0 0.0
    %388 = vmatpush1.msra.mxu0 0.0
    %389 = vmatprep.subr.mxu0 0.0
    %390 = vmatpush1.msra.mxu0 0.0
    %391 = vmatprep.subr.mxu0 0.0
    %392 = vmatpush1.msra.mxu0 0.0
    %393 = vmatprep.subr.mxu0 0.0
    %394 = vmatpush1.msra.mxu0 0.0
    %395 = vmatprep.subr.mxu0 0.0
    %396 = vmatpush1.msra.mxu0 0.0
    %397 = vmatprep.subr.mxu0 0.0
    %398 = vmatpush1.msra.mxu0 0.0
    %399 = vmatprep.mubr.f32.mxu0 %v262
    %400 = vmatmul.mubr.f32.gmra.mrb[0].mxu0 %v255
    %v401 = vpop.f32.mrb[0].mxu0
    %v402 = vadd.f32 %v331, %v401
    %v403 = vpop.f32.mrb[0].mxu0
    %v404 = vadd.f32 %v333, %v403
    %405 = vdwg.mxu0
    %406 = vmatprep.subr.mxu0 %v25
    %407 = vmatpush1.msra.mxu0 %v24
    %408 = vmatprep.subr.mxu0 %v29
    %409 = vmatpush1.msra.mxu0 %v28
    %410 = vmatprep.subr.mxu0 %v33
    %411 = vmatpush1.msra.mxu0 %v32
    %412 = vmatprep.subr.mxu0 %v37
    %413 = vmatpush1.msra.mxu0 %v36
    %414 = vmatprep.subr.mxu0 %v41
    %415 = vmatpush1.msra.mxu0 %v40
    %416 = vmatprep.subr.mxu0 %v45
    %417 = vmatpush1.msra.mxu0 %v44
    %418 = vmatprep.subr.mxu0 %v49
    %419 = vmatpush1.msra.mxu0 %v48
    %420 = vmatprep.subr.mxu0 %v53
    %421 = vmatpush1.msra.mxu0 %v52
    %422 = vmatprep.subr.mxu0 %v57
    %423 = vmatpush1.msra.mxu0 %v56
    %424 = vmatprep.subr.mxu0 %v61
    %425 = vmatpush1.msra.mxu0 %v60
    %426 = vmatprep.subr.mxu0 %v65
    %427 = vmatpush1.msra.mxu0 %v64
    %428 = vmatprep.subr.mxu0 %v69
    %429 = vmatpush1.msra.mxu0 %v68
    %430 = vmatprep.subr.mxu0 %v73
    %431 = vmatpush1.msra.mxu0 %v72
    %432 = vmatprep.subr.mxu0 %v77
    %433 = vmatpush1.msra.mxu0 %v76
    %434 = vmatprep.subr.mxu0 %v81
    %435 = vmatpush1.msra.mxu0 %v80
    %436 = vmatprep.subr.mxu0 %v85
    %437 = vmatpush1.msra.mxu0 %v84
    %438 = vmatprep.subr.mxu0 %v89
    %439 = vmatpush1.msra.mxu0 %v88
    %440 = vmatprep.subr.mxu0 %v93
    %441 = vmatpush1.msra.mxu0 %v92
    %442 = vmatprep.subr.mxu0 %v97
    %443 = vmatpush1.msra.mxu0 %v96
    %444 = vmatprep.subr.mxu0 %v101
    %445 = vmatpush1.msra.mxu0 %v100
    %446 = vmatprep.subr.mxu0 %v105
    %447 = vmatpush1.msra.mxu0 %v104
    %448 = vmatprep.subr.mxu0 %v109
    %449 = vmatpush1.msra.mxu0 %v108
    %450 = vmatprep.subr.mxu0 %v113
    %451 = vmatpush1.msra.mxu0 %v112
    %452 = vmatprep.subr.mxu0 %v117
    %453 = vmatpush1.msra.mxu0 %v116
    %454 = vmatprep.subr.mxu0 %v121
    %455 = vmatpush1.msra.mxu0 %v120
    %456 = vmatprep.subr.mxu0 %v125
    %457 = vmatpush1.msra.mxu0 %v124
    %458 = vmatprep.subr.mxu0 %v129
    %459 = vmatpush1.msra.mxu0 %v128
    %460 = vmatprep.subr.mxu0 %v133
    %461 = vmatpush1.msra.mxu0 %v132
    %462 = vmatprep.subr.mxu0 %v137
    %463 = vmatpush1.msra.mxu0 %v136
    %464 = vmatprep.subr.mxu0 %v141
    %465 = vmatpush1.msra.mxu0 %v140
    %466 = vmatprep.subr.mxu0 %v145
    %467 = vmatpush1.msra.mxu0 %v144
    %468 = vmatprep.subr.mxu0 %v149
    %469 = vmatpush1.msra.mxu0 %v148
    %470 = vmatprep.mubr.f32.mxu0 %v256
    %471 = vmatmul.mubr.f32.gmra.mrb[0].mxu0 %v248
    %v472 = vpop.f32.mrb[0].mxu0
    %v473 = vadd.f32 %v231, %v472
    %v474 = vpop.f32.mrb[0].mxu0
    %v475 = vadd.f32 %v235, %v474
    %476 = vdwg.mxu0
    %477 = vmatprep.subr.mxu0 %v153
    %478 = vmatpush1.msra.mxu0 %v152
    %479 = vmatprep.subr.mxu0 %v157
    %480 = vmatpush1.msra.mxu0 %v156
    %481 = vmatprep.subr.mxu0 %v161
    %482 = vmatpush1.msra.mxu0 %v160
    %483 = vmatprep.subr.mxu0 %v165
    %484 = vmatpush1.msra.mxu0 %v164
    %485 = vmatprep.subr.mxu0 %v169
    %486 = vmatpush1.msra.mxu0 %v168
    %487 = vmatprep.subr.mxu0 %v173
    %488 = vmatpush1.msra.mxu0 %v172
    %489 = vmatprep.subr.mxu0 %v177
    %490 = vmatpush1.msra.mxu0 %v176
    %491 = vmatprep.subr.mxu0 %v181
    %492 = vmatpush1.msra.mxu0 %v180
    %493 = vmatprep.subr.mxu0 %v185
    %494 = vmatpush1.msra.mxu0 %v184
    %495 = vmatprep.subr.mxu0 %v189
    %496 = vmatpush1.msra.mxu0 %v188
    %497 = vmatprep.subr.mxu0 %v193
    %498 = vmatpush1.msra.mxu0 %v192
    %499 = vmatprep.subr.mxu0 %v197
    %500 = vmatpush1.msra.mxu0 %v196
    %501 = vmatprep.subr.mxu0 %v201
    %502 = vmatpush1.msra.mxu0 %v200
    %503 = vmatprep.subr.mxu0 %v205
    %504 = vmatpush1.msra.mxu0 %v204
    %505 = vmatprep.subr.mxu0 %v209
    %506 = vmatpush1.msra.mxu0 %v208
    %507 = vmatprep.subr.mxu0 %v213
    %508 = vmatpush1.msra.mxu0 %v212
    %509 = vmatprep.subr.mxu0 %v217
    %510 = vmatpush1.msra.mxu0 %v216
    %511 = vmatprep.subr.mxu0 0.0
    %512 = vmatpush1.msra.mxu0 0.0
    %513 = vmatprep.subr.mxu0 0.0
    %514 = vmatpush1.msra.mxu0 0.0
    %515 = vmatprep.subr.mxu0 0.0
    %516 = vmatpush1.msra.mxu0 0.0
    %517 = vmatprep.subr.mxu0 0.0
    %518 = vmatpush1.msra.mxu0 0.0
    %519 = vmatprep.subr.mxu0 0.0
    %520 = vmatpush1.msra.mxu0 0.0
    %521 = vmatprep.subr.mxu0 0.0
    %522 = vmatpush1.msra.mxu0 0.0
    %523 = vmatprep.subr.mxu0 0.0
    %524 = vmatpush1.msra.mxu0 0.0
    %525 = vmatprep.subr.mxu0 0.0
    %526 = vmatpush1.msra.mxu0 0.0
    %527 = vmatprep.subr.mxu0 0.0
    %528 = vmatpush1.msra.mxu0 0.0
    %529 = vmatprep.subr.mxu0 0.0
    %530 = vmatpush1.msra.mxu0 0.0
    %531 = vmatprep.subr.mxu0 0.0
    %532 = vmatpush1.msra.mxu0 0.0
    %533 = vmatprep.subr.mxu0 0.0
    %534 = vmatpush1.msra.mxu0 0.0
    %535 = vmatprep.subr.mxu0 0.0
    %536 = vmatpush1.msra.mxu0 0.0
    %537 = vmatprep.subr.mxu0 0.0
    %538 = vmatpush1.msra.mxu0 0.0
    %539 = vmatprep.subr.mxu0 0.0
    %540 = vmatpush1.msra.mxu0 0.0
    %541 = vmatprep.mubr.f32.mxu0 %v262
    %542 = vmatmul.mubr.f32.gmra.mrb[0].mxu0 %v255
    %v543 = vpop.f32.mrb[0].mxu0
    %v544 = vadd.f32 %v473, %v543
    %v545 = vpop.f32.mrb[0].mxu0
    %v546 = vadd.f32 %v475, %v545
    %547 = vdwg.mxu0
    %v548 = vmax.f32 %v402, 0.0
    %v549 = vmax.f32 %v404, 0.0
    %v550 = vmax.f32 %v544, 0.0
    %v551 = vmax.f32 %v546, 0.0
    %v552 = vld [vmem:[%s3] sm:$0xff]
    %v553 = vld [vmem:[%s3 + $0x8] sm:$0xff]
    %v554 = vld [vmem:[%s3 + $0x10] sm:$0xff]
    %v555 = vld [vmem:[%s3 + $0x18] sm:$0xff]
    %v556 = vld [vmem:[%s3 + $0x20] sm:$0xff]
    %v557 = vld [vmem:[%s3 + $0x28] sm:$0xff]
    %v558 = vld [vmem:[%s3 + $0x30] sm:$0xff]
    %v559 = vld [vmem:[%s3 + $0x38] sm:$0xff]
    %v560 = vld [vmem:[%s3 + $0x40] sm:$0xff]
    %v561 = vld [vmem:[%s3 + $0x48] sm:$0xff]
    %v562 = vld [vmem:[%s3 + $0x50] sm:$0xff]
    %v563 = vld [vmem:[%s3 + $0x58] sm:$0xff]
    %v564 = vld [vmem:[%s3 + $0x60] sm:$0xff]
    %v565 = vld [vmem:[%s3 + $0x68] sm:$0xff]
    %v566 = vld [vmem:[%s3 + $0x70] sm:$0xff]
    %v567 = vld [vmem:[%s3 + $0x78] sm:$0xff]
    %v568 = vld [vmem:[%s3 + $0x80] sm:$0xff]
    %v569 = vld [vmem:[%s3 + $0x88] sm:$0xff]
    %v570 = vld [vmem:[%s3 + $0x90] sm:$0xff]
    %v571 = vld [vmem:[%s3 + $0x98] sm:$0xff]
    %v572 = vld [vmem:[%s3 + $0xa0] sm:$0xff]
    %v573 = vld [vmem:[%s3 + $0xa8] sm:$0xff]
    %v574 = vld [vmem:[%s3 + $0xb0] sm:$0xff]
    %v575 = vld [vmem:[%s3 + $0xb8] sm:$0xff]
    %v576 = vld [vmem:[%s3 + $0xc0] sm:$0xff]
    %v577 = vld [vmem:[%s3 + $0xc8] sm:$0xff]
    %v578 = vld [vmem:[%s3 + $0xd0] sm:$0xff]
    %v579 = vld [vmem:[%s3 + $0xd8] sm:$0xff]
    %v580 = vld [vmem:[%s3 + $0xe0] sm:$0xff]
    %v581 = vld [vmem:[%s3 + $0xe8] sm:$0xff]
    %v582 = vld [vmem:[%s3 + $0xf0] sm:$0xff]
    %v583 = vld [vmem:[%s3 + $0xf8] sm:$0xff]
    %v584 = vld [vmem:[%s3 + $0x100] sm:$0xff]
    %v585 = vld [vmem:[%s3 + $0x108] sm:$0xff]
    %v586 = vld [vmem:[%s3 + $0x110] sm:$0xff]
    %v587 = vld [vmem:[%s3 + $0x118] sm:$0xff]
    %v588 = vld [vmem:[%s3 + $0x120] sm:$0xff]
    %v589 = vld [vmem:[%s3 + $0x128] sm:$0xff]
    %v590 = vld [vmem:[%s3 + $0x130] sm:$0xff]
    %v591 = vld [vmem:[%s3 + $0x138] sm:$0xff]
    %v592 = vld [vmem:[%s3 + $0x140] sm:$0xff]
    %v593 = vld [vmem:[%s3 + $0x148] sm:$0xff]
    %v594 = vld [vmem:[%s3 + $0x150] sm:$0xff]
    %v595 = vld [vmem:[%s3 + $0x158] sm:$0xff]
    %v596 = vld [vmem:[%s3 + $0x160] sm:$0xff]
    %v597 = vld [vmem:[%s3 + $0x168] sm:$0xff]
    %v598 = vld [vmem:[%s3 + $0x170] sm:$0xff]
    %v599 = vld [vmem:[%s3 + $0x178] sm:$0xff]
    %v600 = vld [vmem:[%s3 + $0x180] sm:$0xff]
    %v601 = vld [vmem:[%s4] sm:$0x1]
    %v603 = vlaneseq
    %v604 = vshrl.u32 %v603, 7
    %v605 = vsub.s32 0, %v604
    %v606 = vrot.slane %v601, %v605
    %v609 = vsel %vm261, %v551, 0
    %611 = vmatprep.subr.mxu0 0.0
    %612 = vmatpush1.msra.mxu0 %v552
    %613 = vmatprep.subr.mxu0 0.0
    %614 = vmatpush1.msra.mxu0 %v553
    %615 = vmatprep.subr.mxu0 0.0
    %616 = vmatpush1.msra.mxu0 %v554
    %617 = vmatprep.subr.mxu0 0.0
    %618 = vmatpush1.msra.mxu0 %v555
    %619 = vmatprep.subr.mxu0 0.0
    %620 = vmatpush1.msra.mxu0 %v556
    %621 = vmatprep.subr.mxu0 0.0
    %622 = vmatpush1.msra.mxu0 %v557
    %623 = vmatprep.subr.mxu0 0.0
    %624 = vmatpush1.msra.mxu0 %v558
    %625 = vmatprep.subr.mxu0 0.0
    %626 = vmatpush1.msra.mxu0 %v559
    %627 = vmatprep.subr.mxu0 0.0
    %628 = vmatpush1.msra.mxu0 %v560
    %629 = vmatprep.subr.mxu0 0.0
    %630 = vmatpush1.msra.mxu0 %v561
    %631 = vmatprep.subr.mxu0 0.0
    %632 = vmatpush1.msra.mxu0 %v562
    %633 = vmatprep.subr.mxu0 0.0
    %634 = vmatpush1.msra.mxu0 %v563
    %635 = vmatprep.subr.mxu0 0.0
    %636 = vmatpush1.msra.mxu0 %v564
    %637 = vmatprep.subr.mxu0 0.0
    %638 = vmatpush1.msra.mxu0 %v565
    %639 = vmatprep.subr.mxu0 0.0
    %640 = vmatpush1.msra.mxu0 %v566
    %641 = vmatprep.subr.mxu0 0.0
    %642 = vmatpush1.msra.mxu0 %v567
    %643 = vmatprep.subr.mxu0 0.0
    %644 = vmatpush1.msra.mxu0 %v568
    %645 = vmatprep.subr.mxu0 0.0
    %646 = vmatpush1.msra.mxu0 %v569
    %647 = vmatprep.subr.mxu0 0.0
    %648 = vmatpush1.msra.mxu0 %v570
    %649 = vmatprep.subr.mxu0 0.0
    %650 = vmatpush1.msra.mxu0 %v571
    %651 = vmatprep.subr.mxu0 0.0
    %652 = vmatpush1.msra.mxu0 %v572
    %653 = vmatprep.subr.mxu0 0.0
    %654 = vmatpush1.msra.mxu0 %v573
    %655 = vmatprep.subr.mxu0 0.0
    %656 = vmatpush1.msra.mxu0 %v574
    %657 = vmatprep.subr.mxu0 0.0
    %658 = vmatpush1.msra.mxu0 %v575
    %659 = vmatprep.subr.mxu0 0.0
    %660 = vmatpush1.msra.mxu0 %v576
    %661 = vmatprep.subr.mxu0 0.0
    %662 = vmatpush1.msra.mxu0 %v577
    %663 = vmatprep.subr.mxu0 0.0
    %664 = vmatpush1.msra.mxu0 %v578
    %665 = vmatprep.subr.mxu0 0.0
    %666 = vmatpush1.msra.mxu0 %v579
    %667 = vmatprep.subr.mxu0 0.0
    %668 = vmatpush1.msra.mxu0 %v580
    %669 = vmatprep.subr.mxu0 0.0
    %670 = vmatpush1.msra.mxu0 %v581
    %671 = vmatprep.subr.mxu0 0.0
    %672 = vmatpush1.msra.mxu0 %v582
    %673 = vmatprep.subr.mxu0 0.0
    %674 = vmatpush1.msra.mxu0 %v583
    %675 = vmatprep.mubr.f32.mxu0 %v549
    %676 = vmatmul.mubr.f32.gmra.mrb[0].mxu0 %v548
    %v677 = vpop.f32.mrb[0].mxu0
    %v678 = vadd.f32 %v606, %v677
    %v679 = vpop.f32.mrb[0].mxu0
    %680 = vdwg.mxu0
    %681 = vmatprep.subr.mxu0 0.0
    %682 = vmatpush1.msra.mxu0 %v584
    %683 = vmatprep.subr.mxu0 0.0
    %684 = vmatpush1.msra.mxu0 %v585
    %685 = vmatprep.subr.mxu0 0.0
    %686 = vmatpush1.msra.mxu0 %v586
    %687 = vmatprep.subr.mxu0 0.0
    %688 = vmatpush1.msra.mxu0 %v587
    %689 = vmatprep.subr.mxu0 0.0
    %690 = vmatpush1.msra.mxu0 %v588
    %691 = vmatprep.subr.mxu0 0.0
    %692 = vmatpush1.msra.mxu0 %v589
    %693 = vmatprep.subr.mxu0 0.0
    %694 = vmatpush1.msra.mxu0 %v590
    %695 = vmatprep.subr.mxu0 0.0
    %696 = vmatpush1.msra.mxu0 %v591
    %697 = vmatprep.subr.mxu0 0.0
    %698 = vmatpush1.msra.mxu0 %v592
    %699 = vmatprep.subr.mxu0 0.0
    %700 = vmatpush1.msra.mxu0 %v593
    %701 = vmatprep.subr.mxu0 0.0
    %702 = vmatpush1.msra.mxu0 %v594
    %703 = vmatprep.subr.mxu0 0.0
    %704 = vmatpush1.msra.mxu0 %v595
    %705 = vmatprep.subr.mxu0 0.0
    %706 = vmatpush1.msra.mxu0 %v596
    %707 = vmatprep.subr.mxu0 0.0
    %708 = vmatpush1.msra.mxu0 %v597
    %709 = vmatprep.subr.mxu0 0.0
    %710 = vmatpush1.msra.mxu0 %v598
    %711 = vmatprep.subr.mxu0 0.0
    %712 = vmatpush1.msra.mxu0 %v599
    %713 = vmatprep.subr.mxu0 0.0
    %714 = vmatpush1.msra.mxu0 %v600
    %715 = vmatprep.subr.mxu0 0.0
    %716 = vmatpush1.msra.mxu0 0.0
    %717 = vmatprep.subr.mxu0 0.0
    %718 = vmatpush1.msra.mxu0 0.0
    %719 = vmatprep.subr.mxu0 0.0
    %720 = vmatpush1.msra.mxu0 0.0
    %721 = vmatprep.subr.mxu0 0.0
    %722 = vmatpush1.msra.mxu0 0.0
    %723 = vmatprep.subr.mxu0 0.0
    %724 = vmatpush1.msra.mxu0 0.0
    %725 = vmatprep.subr.mxu0 0.0
    %726 = vmatpush1.msra.mxu0 0.0
    %727 = vmatprep.subr.mxu0 0.0
    %728 = vmatpush1.msra.mxu0 0.0
    %729 = vmatprep.subr.mxu0 0.0
    %730 = vmatpush1.msra.mxu0 0.0
    %731 = vmatprep.subr.mxu0 0.0
    %732 = vmatpush1.msra.mxu0 0.0
    %733 = vmatprep.subr.mxu0 0.0
    %734 = vmatpush1.msra.mxu0 0.0
    %735 = vmatprep.subr.mxu0 0.0
    %736 = vmatpush1.msra.mxu0 0.0
    %737 = vmatprep.subr.mxu0 0.0
    %738 = vmatpush1.msra.mxu0 0.0
    %739 = vmatprep.subr.mxu0 0.0
    %740 = vmatpush1.msra.mxu0 0.0
    %741 = vmatprep.subr.mxu0 0.0
    %742 = vmatpush1.msra.mxu0 0.0
    %743 = vmatprep.subr.mxu0 0.0
    %744 = vmatpush1.msra.mxu0 0.0
    %745 = vmatprep.mubr.f32.mxu0 %v609
    %746 = vmatmul.mubr.f32.gmra.mrb[0].mxu0 %v550
    %v747 = vpop.f32.mrb[0].mxu0
    %v748 = vadd.f32 %v678, %v747
    %v749 = vpop.f32.mrb[0].mxu0
    %750 = vdwg.mxu0
    %vm751 = vcmask 74752
    %752 = vst.msk [vmem:[#allocation2] sm:$0x3] %vm751, %v748
    // Predicated region
    $region22: #{_lambda_.5} parent=1 // pred_check
      _
    $region23: #{_lambda_.5} parent=1 // pred_check_branch
      %754 = sbr.rel (0) target = $region25
    $region24: #{_lambda_.5} parent=1 // pred_region
      %s756 = ssub.s32 32, 32
      %757 = vsyncadd [#allocation3], %s756
      %s759 = sshll.u32 [#allocation2], 4
      %s760 = int_to_ptr.vmem [resolvable:$true] %s759
      %762 = dma.vmem_to_hbm [thread:$0]  %s760, 32, %s5, [#allocation3]
    $region25: #{_lambda_.5} parent=1 // pred_fallthru
      _
    // Predicated region
    $region26: #{_lambda_.5} parent=1 // pred_check
      _
    $region27: #{_lambda_.5} parent=1 // pred_check_branch
      %764 = sbr.rel (0) target = $region29
    $region28: #{_lambda_.5} parent=1 // pred_region
      %765 = dma.done [#allocation3], 32
    $region29: #{_lambda_.5} parent=1 // pred_fallthru
      _
    %766 = vsyncpa [#allocation3], 1

</llo_original>
